<compile_context>
chip_gen: v5e
topology: v5e:2x2
jax: 0.10.0
libtpu: 0.0.40
codegen_flags: <defaults>
</compile_context>

<pallas_src>
import functools

import jax
import jax.numpy as jnp
from jax.experimental import pallas as pl
from jax.experimental.pallas import tpu as pltpu


def _lstm_kernel(x_ref,                    # (T*B, D)  rows grouped per timestep
                 w_ih0, w_hh0, b0,         # (D,4H), (H,4H), (1,4H)
                 w_ih1, w_hh1, b1,         # (H,4H), (H,4H), (1,4H)
                 w_ih2, w_hh2, b2,         # (H,4H), (H,4H), (1,4H)
                 w_out, b_out,             # (H,W), (1,W)
                 out_ref,                  # (B, W)
                 xw0_sc,                   # VMEM scratch (T*B, 4H)
                 *, seq_len, batch):
    H = w_hh0.shape[0]
    B = batch
    T = seq_len
    f32 = jnp.float32

    # --- Prologue: hoisted layer-0 input projection (+ fused bias), off the
    # recurrent critical path. One big (T*B, D) x (D, 4H) MXU pass.
    xw0_sc[...] = (jnp.dot(x_ref[...], w_ih0[...],
                           preferred_element_type=f32) + b0[...])

    # Hoisted bias broadcasts and the g-gate lane mask (lanes [2H, 3H)).
    b1_b = jnp.broadcast_to(b1[...], (B, 4 * H))
    b2_b = jnp.broadcast_to(b2[...], (B, 4 * H))
    lane = jax.lax.broadcasted_iota(jnp.int32, (B, 4 * H), 1)
    g_mask = (lane >= 2 * H) & (lane < 3 * H)

    def gates_to_hc(gates, c_prev):
        # Full-vreg EUP: sigmoid + tanh over (B, 4H), blend the tanh (g) lanes,
        # then slice i/f/g/o.  PyTorch gate order [i, f, g, o]; all math in f32
        # (v5e has no bf16 VPU/EUP).
        sig = jax.nn.sigmoid(gates)
        th = jnp.tanh(gates)
        act = jnp.where(g_mask, th, sig)
        i_g = act[:, 0 * H:1 * H]
        f_g = act[:, 1 * H:2 * H]
        g_g = act[:, 2 * H:3 * H]
        o_g = act[:, 3 * H:4 * H]
        c_new = f_g * c_prev + i_g * g_g
        h_new = o_g * jnp.tanh(c_new)
        return h_new, c_new

    z = jnp.zeros((B, H), f32)
    h0 = c0 = h1 = c1 = h2 = c2 = z

    # --- Layer/time wavefront over anti-diagonals s = t + l, s in [0, T+2).
    # At step s the three cells (0,s), (1,s-1), (2,s-2) are computed from the
    # *previous* step's carries only, so they are mutually independent and the
    # scheduler can interleave their matmuls / transcendentals / gate math.
    # Statically unrolled (T is tiny); for long T move the steady-state band
    # s in [2, T) into a lax.fori_loop with partial unroll.
    for s in range(T + 2):
        t0, t1, t2 = s, s - 1, s - 2
        h0n, c0n = h0, c0
        h1n, c1n = h1, c1
        h2n, c2n = h2, c2

        if 0 <= t0 < T:     # layer 0, time t0 : x-projection precomputed.
            g0 = xw0_sc[t0 * B:(t0 + 1) * B, :] + jnp.dot(
                h0, w_hh0[...], preferred_element_type=f32)
            h0n, c0n = gates_to_hc(g0, c0)

        if 0 <= t1 < T:     # layer 1, time t1 : uses previous-step h0 (= h0(t1)).
            g1 = (jnp.dot(h0, w_ih1[...], preferred_element_type=f32)
                  + jnp.dot(h1, w_hh1[...], preferred_element_type=f32)
                  + b1_b)
            h1n, c1n = gates_to_hc(g1, c1)

        if 0 <= t2 < T:     # layer 2, time t2 : uses previous-step h1 (= h1(t2)).
            g2 = (jnp.dot(h1, w_ih2[...], preferred_element_type=f32)
                  + jnp.dot(h2, w_hh2[...], preferred_element_type=f32)
                  + b2_b)
            h2n, c2n = gates_to_hc(g2, c2)

        h0, c0, h1, c1, h2, c2 = h0n, c0n, h1n, c1n, h2n, c2n

    # Final classifier on the last timestep's top-layer hidden state h2(T-1).
    out_ref[...] = (jnp.dot(h2, w_out[...], preferred_element_type=f32)
                    + b_out[...]).astype(out_ref.dtype)


def lstm_classifier_pallas(x, params):
    """x: (B, T, D) float32. Returns (B, num_ways) float32."""
    B, T, D = x.shape
    H = params["w_hh0"].shape[0]
    W = params["w_out"].shape[1]

    # Pad batch to a full sublane group (multiple of 8); hardware pads anyway.
    B_pad = max(8, -(-B // 8) * 8)
    if B_pad != B:
        x = jnp.pad(x, ((0, B_pad - B), (0, 0), (0, 0)))

    # (B,T,D) -> (T,B,D) -> (T*B, D): one contiguous, sublane-aligned row block
    # of B rows per timestep (tiny XLA-side reshape; avoids in-kernel reshapes).
    x_rows = jnp.transpose(x, (1, 0, 2)).reshape(T * B_pad, D)

    weight_args = [
        params["w_ih0"], params["w_hh0"], params["b0"],
        params["w_ih1"], params["w_hh1"], params["b1"],
        params["w_ih2"], params["w_hh2"], params["b2"],
        params["w_out"], params["b_out"],
    ]

    vmem = pl.BlockSpec(memory_space=pltpu.MemorySpace.VMEM)
    out = pl.pallas_call(
        functools.partial(_lstm_kernel, seq_len=T, batch=B_pad),
        out_shape=jax.ShapeDtypeStruct((B_pad, W), jnp.float32),
        in_specs=[vmem] * (1 + len(weight_args)),
        out_specs=vmem,
        scratch_shapes=[pltpu.VMEM((T * B_pad, 4 * H), jnp.float32)],
    )(x_rows, *weight_args)

    return out[:B]


def init_params(key, num_in, num_hidden, num_ways):
    """Deterministic init, mimicking PyTorch uniform(-1/sqrt(H), 1/sqrt(H)).
    Weights are stored pre-transposed (in, 4H) once, so the per-call wrapper
    does no weight prep."""
    H = num_hidden
    bound = 1.0 / jnp.sqrt(jnp.float32(H))
    params = {}
    in_sizes = [num_in, H, H]
    for l in range(3):
        key, k1, k2, k3, k4 = jax.random.split(key, 5)
        w_ih = jax.random.uniform(k1, (4 * H, in_sizes[l]), jnp.float32, -bound, bound)
        w_hh = jax.random.uniform(k2, (4 * H, H), jnp.float32, -bound, bound)
        b_ih = jax.random.uniform(k3, (4 * H,), jnp.float32, -bound, bound)
        b_hh = jax.random.uniform(k4, (4 * H,), jnp.float32, -bound, bound)
        params[f"w_ih{l}"] = w_ih.T                         # (in, 4H)
        params[f"w_hh{l}"] = w_hh.T                         # (H, 4H)
        params[f"b{l}"] = (b_ih + b_hh).reshape(1, 4 * H)   # (1, 4H)
    key, k1, k2 = jax.random.split(key, 3)
    ob = 1.0 / jnp.sqrt(jnp.float32(H))
    params["w_out"] = jax.random.uniform(k1, (num_ways, H), jnp.float32, -ob, ob).T  # (H, W)
    params["b_out"] = jax.random.uniform(k2, (num_ways,), jnp.float32, -ob, ob).reshape(1, -1)
    return params


def lstm_classifier_ref(x, params):
    """Pure-JAX reference of the PyTorch forward (unfused, per-timestep)."""
    B, T, D = x.shape
    H = params["w_hh0"].shape[0]
    hs = [jnp.zeros((B, H), jnp.float32) for _ in range(3)]
    cs = [jnp.zeros((B, H), jnp.float32) for _ in range(3)]
    for t in range(T):
        inp = x[:, t, :]
        for l in range(3):
            gates = (inp @ params[f"w_ih{l}"] + hs[l] @ params[f"w_hh{l}"]
                     + params[f"b{l}"])
            i_g = jax.nn.sigmoid(gates[:, :H])
            f_g = jax.nn.sigmoid(gates[:, H:2 * H])
            g_g = jnp.tanh(gates[:, 2 * H:3 * H])
            o_g = jax.nn.sigmoid(gates[:, 3 * H:])
            cs[l] = f_g * cs[l] + i_g * g_g
            hs[l] = o_g * jnp.tanh(cs[l])
            inp = hs[l]
    return inp @ params["w_out"] + params["b_out"]


if __name__ == "__main__":
    B, T, D = 4, 8, 16           # batch, seq, num_in
    H, W = 32, 8                 # hp.num_hidden, hp.num_ways

    key = jax.random.PRNGKey(0)
    key, kx, kp = jax.random.split(key, 3)
    x = jax.random.normal(kx, (B, T, D), jnp.float32)
    params = init_params(kp, D, H, W)

    out = jax.block_until_ready(lstm_classifier_pallas(x, params))

    ref = lstm_classifier_ref(x, params)
    assert out.shape == (B, W)
    assert jnp.allclose(out, ref, atol=1e-5, rtol=1e-5), (
        f"max err {jnp.max(jnp.abs(out - ref))}")
    print("KERNEL_OK")
</pallas_src>

<mosaic_0001>
module attributes {stable_mosaic.version = 11 : i64} {
  func.func @_lstm_kernel(%arg0: memref<64x16xf32, #tpu.memory_space<vmem>>, %arg1: memref<16x128xf32, #tpu.memory_space<vmem>>, %arg2: memref<32x128xf32, #tpu.memory_space<vmem>>, %arg3: memref<1x128xf32, #tpu.memory_space<vmem>>, %arg4: memref<32x128xf32, #tpu.memory_space<vmem>>, %arg5: memref<32x128xf32, #tpu.memory_space<vmem>>, %arg6: memref<1x128xf32, #tpu.memory_space<vmem>>, %arg7: memref<32x128xf32, #tpu.memory_space<vmem>>, %arg8: memref<32x128xf32, #tpu.memory_space<vmem>>, %arg9: memref<1x128xf32, #tpu.memory_space<vmem>>, %arg10: memref<32x8xf32, #tpu.memory_space<vmem>>, %arg11: memref<1x8xf32, #tpu.memory_space<vmem>>, %arg12: memref<8x8xf32, #tpu.memory_space<vmem>>, %arg13: memref<64x128xf32, #tpu.memory_space<vmem>>) attributes {dimension_semantics = [], scalar_prefetch = 0 : i64, scratch_operands = 1 : i64, tpu.core_type = #tpu.core_type<tc>} {
    %c0 = arith.constant 0 : index
    %c0_0 = arith.constant 0 : index
    %0 = vector.load %arg0[%c0, %c0_0] : memref<64x16xf32, #tpu.memory_space<vmem>>, vector<64x16xf32>
    %c0_1 = arith.constant 0 : index
    %c0_2 = arith.constant 0 : index
    %1 = vector.load %arg1[%c0_1, %c0_2] : memref<16x128xf32, #tpu.memory_space<vmem>>, vector<16x128xf32>
    %cst = arith.constant dense<0.000000e+00> : vector<64x128xf32>
    %2 = tpu.matmul %0, %1, %cst {dimension_numbers = #tpu.dot_dimension_numbers<[1], [0], [0], [1], [0, 0, 1, 1], [], []>} : vector<64x16xf32>, vector<16x128xf32>, vector<64x128xf32> -> vector<64x128xf32>
    %c0_3 = arith.constant 0 : index
    %c0_4 = arith.constant 0 : index
    %3 = vector.load %arg3[%c0_3, %c0_4] : memref<1x128xf32, #tpu.memory_space<vmem>>, vector<1x128xf32>
    %4 = vector.broadcast %3 : vector<1x128xf32> to vector<64x128xf32>
    %5 = arith.addf %2, %4 : vector<64x128xf32>
    %c0_5 = arith.constant 0 : index
    %c0_6 = arith.constant 0 : index
    %6 = vector.load %arg13[%c0_5, %c0_6] : memref<64x128xf32, #tpu.memory_space<vmem>>, vector<64x128xf32>
    tpu.vector_store %arg13[%c0_5, %c0_6], %5 {strides = array<i32>} : memref<64x128xf32, #tpu.memory_space<vmem>>, vector<64x128xf32>,
    %c0_7 = arith.constant 0 : index
    %c0_8 = arith.constant 0 : index
    %7 = vector.load %arg6[%c0_7, %c0_8] : memref<1x128xf32, #tpu.memory_space<vmem>>, vector<1x128xf32>
    %8 = vector.shape_cast %7 : vector<1x128xf32> to vector<1x128xf32>
    %9 = vector.broadcast %8 : vector<1x128xf32> to vector<8x128xf32>
    %c0_9 = arith.constant 0 : index
    %c0_10 = arith.constant 0 : index
    %10 = vector.load %arg9[%c0_9, %c0_10] : memref<1x128xf32, #tpu.memory_space<vmem>>, vector<1x128xf32>
    %11 = vector.shape_cast %10 : vector<1x128xf32> to vector<1x128xf32>
    %12 = vector.broadcast %11 : vector<1x128xf32> to vector<8x128xf32>
    %13 = tpu.iota {dimensions = array<i32: 1>} : vector<8x128xi32>
    %c64_i32 = arith.constant 64 : i32
    %14 = vector.broadcast %c64_i32 : i32 to vector<8x128xi32>
    %15 = arith.cmpi sge, %13, %14 : vector<8x128xi32>
    %c96_i32 = arith.constant 96 : i32
    %16 = vector.broadcast %c96_i32 : i32 to vector<8x128xi32>
    %17 = arith.cmpi slt, %13, %16 : vector<8x128xi32>
    %18 = arith.andi %15, %17 : vector<8x128xi1>
    %cst_11 = arith.constant 0.000000e+00 : f32
    %19 = vector.broadcast %cst_11 : f32 to vector<8x32xf32>
    %c0_12 = arith.constant 0 : index
    %c0_13 = arith.constant 0 : index
    %20 = vector.load %arg13[%c0_12, %c0_13] : memref<64x128xf32, #tpu.memory_space<vmem>>, vector<8x128xf32>
    %c0_14 = arith.constant 0 : index
    %c0_15 = arith.constant 0 : index
    %21 = vector.load %arg2[%c0_14, %c0_15] : memref<32x128xf32, #tpu.memory_space<vmem>>, vector<32x128xf32>
    %cst_16 = arith.constant dense<0.000000e+00> : vector<8x128xf32>
    %22 = tpu.matmul %19, %21, %cst_16 {dimension_numbers = #tpu.dot_dimension_numbers<[1], [0], [0], [1], [0, 0, 1, 1], [], []>} : vector<8x32xf32>, vector<32x128xf32>, vector<8x128xf32> -> vector<8x128xf32>
    %23 = arith.addf %20, %22 : vector<8x128xf32>
    %24 = arith.negf %23 : vector<8x128xf32>
    %25 = math.exp %24 : vector<8x128xf32>
    %cst_17 = arith.constant 1.000000e+00 : f32
    %26 = vector.broadcast %cst_17 : f32 to vector<8x128xf32>
    %27 = arith.addf %26, %25 : vector<8x128xf32>
    %28 = arith.divf %26, %27 : vector<8x128xf32>
    %29 = math.tanh %23 : vector<8x128xf32>
    %30 = arith.select %18, %29, %28 : vector<8x128xi1>, vector<8x128xf32>
    %31 = vector.extract_strided_slice %30 {offsets = [0, 0], sizes = [8, 32], strides = [1, 1]} : vector<8x128xf32> to vector<8x32xf32>
    %32 = vector.extract_strided_slice %30 {offsets = [0, 32], sizes = [8, 32], strides = [1, 1]} : vector<8x128xf32> to vector<8x32xf32>
    %33 = vector.extract_strided_slice %30 {offsets = [0, 64], sizes = [8, 32], strides = [1, 1]} : vector<8x128xf32> to vector<8x32xf32>
    %34 = vector.extract_strided_slice %30 {offsets = [0, 96], sizes = [8, 32], strides = [1, 1]} : vector<8x128xf32> to vector<8x32xf32>
    %35 = arith.mulf %32, %19 : vector<8x32xf32>
    %36 = arith.mulf %31, %33 : vector<8x32xf32>
    %37 = arith.addf %35, %36 : vector<8x32xf32>
    %38 = math.tanh %37 : vector<8x32xf32>
    %39 = arith.mulf %34, %38 : vector<8x32xf32>
    %c8 = arith.constant 8 : index
    %c0_18 = arith.constant 0 : index
    %40 = vector.load %arg13[%c8, %c0_18] : memref<64x128xf32, #tpu.memory_space<vmem>>, vector<8x128xf32>
    %c0_19 = arith.constant 0 : index
    %c0_20 = arith.constant 0 : index
    %41 = vector.load %arg2[%c0_19, %c0_20] : memref<32x128xf32, #tpu.memory_space<vmem>>, vector<32x128xf32>
    %cst_21 = arith.constant dense<0.000000e+00> : vector<8x128xf32>
    %42 = tpu.matmul %39, %41, %cst_21 {dimension_numbers = #tpu.dot_dimension_numbers<[1], [0], [0], [1], [0, 0, 1, 1], [], []>} : vector<8x32xf32>, vector<32x128xf32>, vector<8x128xf32> -> vector<8x128xf32>
    %43 = arith.addf %40, %42 : vector<8x128xf32>
    %44 = arith.negf %43 : vector<8x128xf32>
    %45 = math.exp %44 : vector<8x128xf32>
    %cst_22 = arith.constant 1.000000e+00 : f32
    %46 = vector.broadcast %cst_22 : f32 to vector<8x128xf32>
    %47 = arith.addf %46, %45 : vector<8x128xf32>
    %48 = arith.divf %46, %47 : vector<8x128xf32>
    %49 = math.tanh %43 : vector<8x128xf32>
    %50 = arith.select %18, %49, %48 : vector<8x128xi1>, vector<8x128xf32>
    %51 = vector.extract_strided_slice %50 {offsets = [0, 0], sizes = [8, 32], strides = [1, 1]} : vector<8x128xf32> to vector<8x32xf32>
    %52 = vector.extract_strided_slice %50 {offsets = [0, 32], sizes = [8, 32], strides = [1, 1]} : vector<8x128xf32> to vector<8x32xf32>
    %53 = vector.extract_strided_slice %50 {offsets = [0, 64], sizes = [8, 32], strides = [1, 1]} : vector<8x128xf32> to vector<8x32xf32>
    %54 = vector.extract_strided_slice %50 {offsets = [0, 96], sizes = [8, 32], strides = [1, 1]} : vector<8x128xf32> to vector<8x32xf32>
    %55 = arith.mulf %52, %37 : vector<8x32xf32>
    %56 = arith.mulf %51, %53 : vector<8x32xf32>
    %57 = arith.addf %55, %56 : vector<8x32xf32>
    %58 = math.tanh %57 : vector<8x32xf32>
    %59 = arith.mulf %54, %58 : vector<8x32xf32>
    %c0_23 = arith.constant 0 : index
    %c0_24 = arith.constant 0 : index
    %60 = vector.load %arg4[%c0_23, %c0_24] : memref<32x128xf32, #tpu.memory_space<vmem>>, vector<32x128xf32>
    %cst_25 = arith.constant dense<0.000000e+00> : vector<8x128xf32>
    %61 = tpu.matmul %39, %60, %cst_25 {dimension_numbers = #tpu.dot_dimension_numbers<[1], [0], [0], [1], [0, 0, 1, 1], [], []>} : vector<8x32xf32>, vector<32x128xf32>, vector<8x128xf32> -> vector<8x128xf32>
    %c0_26 = arith.constant 0 : index
    %c0_27 = arith.constant 0 : index
    %62 = vector.load %arg5[%c0_26, %c0_27] : memref<32x128xf32, #tpu.memory_space<vmem>>, vector<32x128xf32>
    %cst_28 = arith.constant dense<0.000000e+00> : vector<8x128xf32>
    %63 = tpu.matmul %19, %62, %cst_28 {dimension_numbers = #tpu.dot_dimension_numbers<[1], [0], [0], [1], [0, 0, 1, 1], [], []>} : vector<8x32xf32>, vector<32x128xf32>, vector<8x128xf32> -> vector<8x128xf32>
    %64 = arith.addf %61, %63 : vector<8x128xf32>
    %65 = arith.addf %64, %9 : vector<8x128xf32>
    %66 = arith.negf %65 : vector<8x128xf32>
    %67 = math.exp %66 : vector<8x128xf32>
    %cst_29 = arith.constant 1.000000e+00 : f32
    %68 = vector.broadcast %cst_29 : f32 to vector<8x128xf32>
    %69 = arith.addf %68, %67 : vector<8x128xf32>
    %70 = arith.divf %68, %69 : vector<8x128xf32>
    %71 = math.tanh %65 : vector<8x128xf32>
    %72 = arith.select %18, %71, %70 : vector<8x128xi1>, vector<8x128xf32>
    %73 = vector.extract_strided_slice %72 {offsets = [0, 0], sizes = [8, 32], strides = [1, 1]} : vector<8x128xf32> to vector<8x32xf32>
    %74 = vector.extract_strided_slice %72 {offsets = [0, 32], sizes = [8, 32], strides = [1, 1]} : vector<8x128xf32> to vector<8x32xf32>
    %75 = vector.extract_strided_slice %72 {offsets = [0, 64], sizes = [8, 32], strides = [1, 1]} : vector<8x128xf32> to vector<8x32xf32>
    %76 = vector.extract_strided_slice %72 {offsets = [0, 96], sizes = [8, 32], strides = [1, 1]} : vector<8x128xf32> to vector<8x32xf32>
    %77 = arith.mulf %74, %19 : vector<8x32xf32>
    %78 = arith.mulf %73, %75 : vector<8x32xf32>
    %79 = arith.addf %77, %78 : vector<8x32xf32>
    %80 = math.tanh %79 : vector<8x32xf32>
    %81 = arith.mulf %76, %80 : vector<8x32xf32>
    %c16 = arith.constant 16 : index
    %c0_30 = arith.constant 0 : index
    %82 = vector.load %arg13[%c16, %c0_30] : memref<64x128xf32, #tpu.memory_space<vmem>>, vector<8x128xf32>
    %c0_31 = arith.constant 0 : index
    %c0_32 = arith.constant 0 : index
    %83 = vector.load %arg2[%c0_31, %c0_32] : memref<32x128xf32, #tpu.memory_space<vmem>>, vector<32x128xf32>
    %cst_33 = arith.constant dense<0.000000e+00> : vector<8x128xf32>
    %84 = tpu.matmul %59, %83, %cst_33 {dimension_numbers = #tpu.dot_dimension_numbers<[1], [0], [0], [1], [0, 0, 1, 1], [], []>} : vector<8x32xf32>, vector<32x128xf32>, vector<8x128xf32> -> vector<8x128xf32>
    %85 = arith.addf %82, %84 : vector<8x128xf32>
    %86 = arith.negf %85 : vector<8x128xf32>
    %87 = math.exp %86 : vector<8x128xf32>
    %cst_34 = arith.constant 1.000000e+00 : f32
    %88 = vector.broadcast %cst_34 : f32 to vector<8x128xf32>
    %89 = arith.addf %88, %87 : vector<8x128xf32>
    %90 = arith.divf %88, %89 : vector<8x128xf32>
    %91 = math.tanh %85 : vector<8x128xf32>
    %92 = arith.select %18, %91, %90 : vector<8x128xi1>, vector<8x128xf32>
    %93 = vector.extract_strided_slice %92 {offsets = [0, 0], sizes = [8, 32], strides = [1, 1]} : vector<8x128xf32> to vector<8x32xf32>
    %94 = vector.extract_strided_slice %92 {offsets = [0, 32], sizes = [8, 32], strides = [1, 1]} : vector<8x128xf32> to vector<8x32xf32>
    %95 = vector.extract_strided_slice %92 {offsets = [0, 64], sizes = [8, 32], strides = [1, 1]} : vector<8x128xf32> to vector<8x32xf32>
    %96 = vector.extract_strided_slice %92 {offsets = [0, 96], sizes = [8, 32], strides = [1, 1]} : vector<8x128xf32> to vector<8x32xf32>
    %97 = arith.mulf %94, %57 : vector<8x32xf32>
    %98 = arith.mulf %93, %95 : vector<8x32xf32>
    %99 = arith.addf %97, %98 : vector<8x32xf32>
    %100 = math.tanh %99 : vector<8x32xf32>
    %101 = arith.mulf %96, %100 : vector<8x32xf32>
    %c0_35 = arith.constant 0 : index
    %c0_36 = arith.constant 0 : index
    %102 = vector.load %arg4[%c0_35, %c0_36] : memref<32x128xf32, #tpu.memory_space<vmem>>, vector<32x128xf32>
    %cst_37 = arith.constant dense<0.000000e+00> : vector<8x128xf32>
    %103 = tpu.matmul %59, %102, %cst_37 {dimension_numbers = #tpu.dot_dimension_numbers<[1], [0], [0], [1], [0, 0, 1, 1], [], []>} : vector<8x32xf32>, vector<32x128xf32>, vector<8x128xf32> -> vector<8x128xf32>
    %c0_38 = arith.constant 0 : index
    %c0_39 = arith.constant 0 : index
    %104 = vector.load %arg5[%c0_38, %c0_39] : memref<32x128xf32, #tpu.memory_space<vmem>>, vector<32x128xf32>
    %cst_40 = arith.constant dense<0.000000e+00> : vector<8x128xf32>
    %105 = tpu.matmul %81, %104, %cst_40 {dimension_numbers = #tpu.dot_dimension_numbers<[1], [0], [0], [1], [0, 0, 1, 1], [], []>} : vector<8x32xf32>, vector<32x128xf32>, vector<8x128xf32> -> vector<8x128xf32>
    %106 = arith.addf %103, %105 : vector<8x128xf32>
    %107 = arith.addf %106, %9 : vector<8x128xf32>
    %108 = arith.negf %107 : vector<8x128xf32>
    %109 = math.exp %108 : vector<8x128xf32>
    %cst_41 = arith.constant 1.000000e+00 : f32
    %110 = vector.broadcast %cst_41 : f32 to vector<8x128xf32>
    %111 = arith.addf %110, %109 : vector<8x128xf32>
    %112 = arith.divf %110, %111 : vector<8x128xf32>
    %113 = math.tanh %107 : vector<8x128xf32>
    %114 = arith.select %18, %113, %112 : vector<8x128xi1>, vector<8x128xf32>
    %115 = vector.extract_strided_slice %114 {offsets = [0, 0], sizes = [8, 32], strides = [1, 1]} : vector<8x128xf32> to vector<8x32xf32>
    %116 = vector.extract_strided_slice %114 {offsets = [0, 32], sizes = [8, 32], strides = [1, 1]} : vector<8x128xf32> to vector<8x32xf32>
    %117 = vector.extract_strided_slice %114 {offsets = [0, 64], sizes = [8, 32], strides = [1, 1]} : vector<8x128xf32> to vector<8x32xf32>
    %118 = vector.extract_strided_slice %114 {offsets = [0, 96], sizes = [8, 32], strides = [1, 1]} : vector<8x128xf32> to vector<8x32xf32>
    %119 = arith.mulf %116, %79 : vector<8x32xf32>
    %120 = arith.mulf %115, %117 : vector<8x32xf32>
    %121 = arith.addf %119, %120 : vector<8x32xf32>
    %122 = math.tanh %121 : vector<8x32xf32>
    %123 = arith.mulf %118, %122 : vector<8x32xf32>
    %c0_42 = arith.constant 0 : index
    %c0_43 = arith.constant 0 : index
    %124 = vector.load %arg7[%c0_42, %c0_43] : memref<32x128xf32, #tpu.memory_space<vmem>>, vector<32x128xf32>
    %cst_44 = arith.constant dense<0.000000e+00> : vector<8x128xf32>
    %125 = tpu.matmul %81, %124, %cst_44 {dimension_numbers = #tpu.dot_dimension_numbers<[1], [0], [0], [1], [0, 0, 1, 1], [], []>} : vector<8x32xf32>, vector<32x128xf32>, vector<8x128xf32> -> vector<8x128xf32>
    %c0_45 = arith.constant 0 : index
    %c0_46 = arith.constant 0 : index
    %126 = vector.load %arg8[%c0_45, %c0_46] : memref<32x128xf32, #tpu.memory_space<vmem>>, vector<32x128xf32>
    %cst_47 = arith.constant dense<0.000000e+00> : vector<8x128xf32>
    %127 = tpu.matmul %19, %126, %cst_47 {dimension_numbers = #tpu.dot_dimension_numbers<[1], [0], [0], [1], [0, 0, 1, 1], [], []>} : vector<8x32xf32>, vector<32x128xf32>, vector<8x128xf32> -> vector<8x128xf32>
    %128 = arith.addf %125, %127 : vector<8x128xf32>
    %129 = arith.addf %128, %12 : vector<8x128xf32>
    %130 = arith.negf %129 : vector<8x128xf32>
    %131 = math.exp %130 : vector<8x128xf32>
    %cst_48 = arith.constant 1.000000e+00 : f32
    %132 = vector.broadcast %cst_48 : f32 to vector<8x128xf32>
    %133 = arith.addf %132, %131 : vector<8x128xf32>
    %134 = arith.divf %132, %133 : vector<8x128xf32>
    %135 = math.tanh %129 : vector<8x128xf32>
    %136 = arith.select %18, %135, %134 : vector<8x128xi1>, vector<8x128xf32>
    %137 = vector.extract_strided_slice %136 {offsets = [0, 0], sizes = [8, 32], strides = [1, 1]} : vector<8x128xf32> to vector<8x32xf32>
    %138 = vector.extract_strided_slice %136 {offsets = [0, 32], sizes = [8, 32], strides = [1, 1]} : vector<8x128xf32> to vector<8x32xf32>
    %139 = vector.extract_strided_slice %136 {offsets = [0, 64], sizes = [8, 32], strides = [1, 1]} : vector<8x128xf32> to vector<8x32xf32>
    %140 = vector.extract_strided_slice %136 {offsets = [0, 96], sizes = [8, 32], strides = [1, 1]} : vector<8x128xf32> to vector<8x32xf32>
    %141 = arith.mulf %138, %19 : vector<8x32xf32>
    %142 = arith.mulf %137, %139 : vector<8x32xf32>
    %143 = arith.addf %141, %142 : vector<8x32xf32>
    %144 = math.tanh %143 : vector<8x32xf32>
    %145 = arith.mulf %140, %144 : vector<8x32xf32>
    %c24 = arith.constant 24 : index
    %c0_49 = arith.constant 0 : index
    %146 = vector.load %arg13[%c24, %c0_49] : memref<64x128xf32, #tpu.memory_space<vmem>>, vector<8x128xf32>
    %c0_50 = arith.constant 0 : index
    %c0_51 = arith.constant 0 : index
    %147 = vector.load %arg2[%c0_50, %c0_51] : memref<32x128xf32, #tpu.memory_space<vmem>>, vector<32x128xf32>
    %cst_52 = arith.constant dense<0.000000e+00> : vector<8x128xf32>
    %148 = tpu.matmul %101, %147, %cst_52 {dimension_numbers = #tpu.dot_dimension_numbers<[1], [0], [0], [1], [0, 0, 1, 1], [], []>} : vector<8x32xf32>, vector<32x128xf32>, vector<8x128xf32> -> vector<8x128xf32>
    %149 = arith.addf %146, %148 : vector<8x128xf32>
    %150 = arith.negf %149 : vector<8x128xf32>
    %151 = math.exp %150 : vector<8x128xf32>
    %cst_53 = arith.constant 1.000000e+00 : f32
    %152 = vector.broadcast %cst_53 : f32 to vector<8x128xf32>
    %153 = arith.addf %152, %151 : vector<8x128xf32>
    %154 = arith.divf %152, %153 : vector<8x128xf32>
    %155 = math.tanh %149 : vector<8x128xf32>
    %156 = arith.select %18, %155, %154 : vector<8x128xi1>, vector<8x128xf32>
    %157 = vector.extract_strided_slice %156 {offsets = [0, 0], sizes = [8, 32], strides = [1, 1]} : vector<8x128xf32> to vector<8x32xf32>
    %158 = vector.extract_strided_slice %156 {offsets = [0, 32], sizes = [8, 32], strides = [1, 1]} : vector<8x128xf32> to vector<8x32xf32>
    %159 = vector.extract_strided_slice %156 {offsets = [0, 64], sizes = [8, 32], strides = [1, 1]} : vector<8x128xf32> to vector<8x32xf32>
    %160 = vector.extract_strided_slice %156 {offsets = [0, 96], sizes = [8, 32], strides = [1, 1]} : vector<8x128xf32> to vector<8x32xf32>
    %161 = arith.mulf %158, %99 : vector<8x32xf32>
    %162 = arith.mulf %157, %159 : vector<8x32xf32>
    %163 = arith.addf %161, %162 : vector<8x32xf32>
    %164 = math.tanh %163 : vector<8x32xf32>
    %165 = arith.mulf %160, %164 : vector<8x32xf32>
    %c0_54 = arith.constant 0 : index
    %c0_55 = arith.constant 0 : index
    %166 = vector.load %arg4[%c0_54, %c0_55] : memref<32x128xf32, #tpu.memory_space<vmem>>, vector<32x128xf32>
    %cst_56 = arith.constant dense<0.000000e+00> : vector<8x128xf32>
    %167 = tpu.matmul %101, %166, %cst_56 {dimension_numbers = #tpu.dot_dimension_numbers<[1], [0], [0], [1], [0, 0, 1, 1], [], []>} : vector<8x32xf32>, vector<32x128xf32>, vector<8x128xf32> -> vector<8x128xf32>
    %c0_57 = arith.constant 0 : index
    %c0_58 = arith.constant 0 : index
    %168 = vector.load %arg5[%c0_57, %c0_58] : memref<32x128xf32, #tpu.memory_space<vmem>>, vector<32x128xf32>
    %cst_59 = arith.constant dense<0.000000e+00> : vector<8x128xf32>
    %169 = tpu.matmul %123, %168, %cst_59 {dimension_numbers = #tpu.dot_dimension_numbers<[1], [0], [0], [1], [0, 0, 1, 1], [], []>} : vector<8x32xf32>, vector<32x128xf32>, vector<8x128xf32> -> vector<8x128xf32>
    %170 = arith.addf %167, %169 : vector<8x128xf32>
    %171 = arith.addf %170, %9 : vector<8x128xf32>
    %172 = arith.negf %171 : vector<8x128xf32>
    %173 = math.exp %172 : vector<8x128xf32>
    %cst_60 = arith.constant 1.000000e+00 : f32
    %174 = vector.broadcast %cst_60 : f32 to vector<8x128xf32>
    %175 = arith.addf %174, %173 : vector<8x128xf32>
    %176 = arith.divf %174, %175 : vector<8x128xf32>
    %177 = math.tanh %171 : vector<8x128xf32>
    %178 = arith.select %18, %177, %176 : vector<8x128xi1>, vector<8x128xf32>
    %179 = vector.extract_strided_slice %178 {offsets = [0, 0], sizes = [8, 32], strides = [1, 1]} : vector<8x128xf32> to vector<8x32xf32>
    %180 = vector.extract_strided_slice %178 {offsets = [0, 32], sizes = [8, 32], strides = [1, 1]} : vector<8x128xf32> to vector<8x32xf32>
    %181 = vector.extract_strided_slice %178 {offsets = [0, 64], sizes = [8, 32], strides = [1, 1]} : vector<8x128xf32> to vector<8x32xf32>
    %182 = vector.extract_strided_slice %178 {offsets = [0, 96], sizes = [8, 32], strides = [1, 1]} : vector<8x128xf32> to vector<8x32xf32>
    %183 = arith.mulf %180, %121 : vector<8x32xf32>
    %184 = arith.mulf %179, %181 : vector<8x32xf32>
    %185 = arith.addf %183, %184 : vector<8x32xf32>
    %186 = math.tanh %185 : vector<8x32xf32>
    %187 = arith.mulf %182, %186 : vector<8x32xf32>
    %c0_61 = arith.constant 0 : index
    %c0_62 = arith.constant 0 : index
    %188 = vector.load %arg7[%c0_61, %c0_62] : memref<32x128xf32, #tpu.memory_space<vmem>>, vector<32x128xf32>
    %cst_63 = arith.constant dense<0.000000e+00> : vector<8x128xf32>
    %189 = tpu.matmul %123, %188, %cst_63 {dimension_numbers = #tpu.dot_dimension_numbers<[1], [0], [0], [1], [0, 0, 1, 1], [], []>} : vector<8x32xf32>, vector<32x128xf32>, vector<8x128xf32> -> vector<8x128xf32>
    %c0_64 = arith.constant 0 : index
    %c0_65 = arith.constant 0 : index
    %190 = vector.load %arg8[%c0_64, %c0_65] : memref<32x128xf32, #tpu.memory_space<vmem>>, vector<32x128xf32>
    %cst_66 = arith.constant dense<0.000000e+00> : vector<8x128xf32>
    %191 = tpu.matmul %145, %190, %cst_66 {dimension_numbers = #tpu.dot_dimension_numbers<[1], [0], [0], [1], [0, 0, 1, 1], [], []>} : vector<8x32xf32>, vector<32x128xf32>, vector<8x128xf32> -> vector<8x128xf32>
    %192 = arith.addf %189, %191 : vector<8x128xf32>
    %193 = arith.addf %192, %12 : vector<8x128xf32>
    %194 = arith.negf %193 : vector<8x128xf32>
    %195 = math.exp %194 : vector<8x128xf32>
    %cst_67 = arith.constant 1.000000e+00 : f32
    %196 = vector.broadcast %cst_67 : f32 to vector<8x128xf32>
    %197 = arith.addf %196, %195 : vector<8x128xf32>
    %198 = arith.divf %196, %197 : vector<8x128xf32>
    %199 = math.tanh %193 : vector<8x128xf32>
    %200 = arith.select %18, %199, %198 : vector<8x128xi1>, vector<8x128xf32>
    %201 = vector.extract_strided_slice %200 {offsets = [0, 0], sizes = [8, 32], strides = [1, 1]} : vector<8x128xf32> to vector<8x32xf32>
    %202 = vector.extract_strided_slice %200 {offsets = [0, 32], sizes = [8, 32], strides = [1, 1]} : vector<8x128xf32> to vector<8x32xf32>
    %203 = vector.extract_strided_slice %200 {offsets = [0, 64], sizes = [8, 32], strides = [1, 1]} : vector<8x128xf32> to vector<8x32xf32>
    %204 = vector.extract_strided_slice %200 {offsets = [0, 96], sizes = [8, 32], strides = [1, 1]} : vector<8x128xf32> to vector<8x32xf32>
    %205 = arith.mulf %202, %143 : vector<8x32xf32>
    %206 = arith.mulf %201, %203 : vector<8x32xf32>
    %207 = arith.addf %205, %206 : vector<8x32xf32>
    %208 = math.tanh %207 : vector<8x32xf32>
    %209 = arith.mulf %204, %208 : vector<8x32xf32>
    %c32 = arith.constant 32 : index
    %c0_68 = arith.constant 0 : index
    %210 = vector.load %arg13[%c32, %c0_68] : memref<64x128xf32, #tpu.memory_space<vmem>>, vector<8x128xf32>
    %c0_69 = arith.constant 0 : index
    %c0_70 = arith.constant 0 : index
    %211 = vector.load %arg2[%c0_69, %c0_70] : memref<32x128xf32, #tpu.memory_space<vmem>>, vector<32x128xf32>
    %cst_71 = arith.constant dense<0.000000e+00> : vector<8x128xf32>
    %212 = tpu.matmul %165, %211, %cst_71 {dimension_numbers = #tpu.dot_dimension_numbers<[1], [0], [0], [1], [0, 0, 1, 1], [], []>} : vector<8x32xf32>, vector<32x128xf32>, vector<8x128xf32> -> vector<8x128xf32>
    %213 = arith.addf %210, %212 : vector<8x128xf32>
    %214 = arith.negf %213 : vector<8x128xf32>
    %215 = math.exp %214 : vector<8x128xf32>
    %cst_72 = arith.constant 1.000000e+00 : f32
    %216 = vector.broadcast %cst_72 : f32 to vector<8x128xf32>
    %217 = arith.addf %216, %215 : vector<8x128xf32>
    %218 = arith.divf %216, %217 : vector<8x128xf32>
    %219 = math.tanh %213 : vector<8x128xf32>
    %220 = arith.select %18, %219, %218 : vector<8x128xi1>, vector<8x128xf32>
    %221 = vector.extract_strided_slice %220 {offsets = [0, 0], sizes = [8, 32], strides = [1, 1]} : vector<8x128xf32> to vector<8x32xf32>
    %222 = vector.extract_strided_slice %220 {offsets = [0, 32], sizes = [8, 32], strides = [1, 1]} : vector<8x128xf32> to vector<8x32xf32>
    %223 = vector.extract_strided_slice %220 {offsets = [0, 64], sizes = [8, 32], strides = [1, 1]} : vector<8x128xf32> to vector<8x32xf32>
    %224 = vector.extract_strided_slice %220 {offsets = [0, 96], sizes = [8, 32], strides = [1, 1]} : vector<8x128xf32> to vector<8x32xf32>
    %225 = arith.mulf %222, %163 : vector<8x32xf32>
    %226 = arith.mulf %221, %223 : vector<8x32xf32>
    %227 = arith.addf %225, %226 : vector<8x32xf32>
    %228 = math.tanh %227 : vector<8x32xf32>
    %229 = arith.mulf %224, %228 : vector<8x32xf32>
    %c0_73 = arith.constant 0 : index
    %c0_74 = arith.constant 0 : index
    %230 = vector.load %arg4[%c0_73, %c0_74] : memref<32x128xf32, #tpu.memory_space<vmem>>, vector<32x128xf32>
    %cst_75 = arith.constant dense<0.000000e+00> : vector<8x128xf32>
    %231 = tpu.matmul %165, %230, %cst_75 {dimension_numbers = #tpu.dot_dimension_numbers<[1], [0], [0], [1], [0, 0, 1, 1], [], []>} : vector<8x32xf32>, vector<32x128xf32>, vector<8x128xf32> -> vector<8x128xf32>
    %c0_76 = arith.constant 0 : index
    %c0_77 = arith.constant 0 : index
    %232 = vector.load %arg5[%c0_76, %c0_77] : memref<32x128xf32, #tpu.memory_space<vmem>>, vector<32x128xf32>
    %cst_78 = arith.constant dense<0.000000e+00> : vector<8x128xf32>
    %233 = tpu.matmul %187, %232, %cst_78 {dimension_numbers = #tpu.dot_dimension_numbers<[1], [0], [0], [1], [0, 0, 1, 1], [], []>} : vector<8x32xf32>, vector<32x128xf32>, vector<8x128xf32> -> vector<8x128xf32>
    %234 = arith.addf %231, %233 : vector<8x128xf32>
    %235 = arith.addf %234, %9 : vector<8x128xf32>
    %236 = arith.negf %235 : vector<8x128xf32>
    %237 = math.exp %236 : vector<8x128xf32>
    %cst_79 = arith.constant 1.000000e+00 : f32
    %238 = vector.broadcast %cst_79 : f32 to vector<8x128xf32>
    %239 = arith.addf %238, %237 : vector<8x128xf32>
    %240 = arith.divf %238, %239 : vector<8x128xf32>
    %241 = math.tanh %235 : vector<8x128xf32>
    %242 = arith.select %18, %241, %240 : vector<8x128xi1>, vector<8x128xf32>
    %243 = vector.extract_strided_slice %242 {offsets = [0, 0], sizes = [8, 32], strides = [1, 1]} : vector<8x128xf32> to vector<8x32xf32>
    %244 = vector.extract_strided_slice %242 {offsets = [0, 32], sizes = [8, 32], strides = [1, 1]} : vector<8x128xf32> to vector<8x32xf32>
    %245 = vector.extract_strided_slice %242 {offsets = [0, 64], sizes = [8, 32], strides = [1, 1]} : vector<8x128xf32> to vector<8x32xf32>
    %246 = vector.extract_strided_slice %242 {offsets = [0, 96], sizes = [8, 32], strides = [1, 1]} : vector<8x128xf32> to vector<8x32xf32>
    %247 = arith.mulf %244, %185 : vector<8x32xf32>
    %248 = arith.mulf %243, %245 : vector<8x32xf32>
    %249 = arith.addf %247, %248 : vector<8x32xf32>
    %250 = math.tanh %249 : vector<8x32xf32>
    %251 = arith.mulf %246, %250 : vector<8x32xf32>
    %c0_80 = arith.constant 0 : index
    %c0_81 = arith.constant 0 : index
    %252 = vector.load %arg7[%c0_80, %c0_81] : memref<32x128xf32, #tpu.memory_space<vmem>>, vector<32x128xf32>
    %cst_82 = arith.constant dense<0.000000e+00> : vector<8x128xf32>
    %253 = tpu.matmul %187, %252, %cst_82 {dimension_numbers = #tpu.dot_dimension_numbers<[1], [0], [0], [1], [0, 0, 1, 1], [], []>} : vector<8x32xf32>, vector<32x128xf32>, vector<8x128xf32> -> vector<8x128xf32>
    %c0_83 = arith.constant 0 : index
    %c0_84 = arith.constant 0 : index
    %254 = vector.load %arg8[%c0_83, %c0_84] : memref<32x128xf32, #tpu.memory_space<vmem>>, vector<32x128xf32>
    %cst_85 = arith.constant dense<0.000000e+00> : vector<8x128xf32>
    %255 = tpu.matmul %209, %254, %cst_85 {dimension_numbers = #tpu.dot_dimension_numbers<[1], [0], [0], [1], [0, 0, 1, 1], [], []>} : vector<8x32xf32>, vector<32x128xf32>, vector<8x128xf32> -> vector<8x128xf32>
    %256 = arith.addf %253, %255 : vector<8x128xf32>
    %257 = arith.addf %256, %12 : vector<8x128xf32>
    %258 = arith.negf %257 : vector<8x128xf32>
    %259 = math.exp %258 : vector<8x128xf32>
    %cst_86 = arith.constant 1.000000e+00 : f32
    %260 = vector.broadcast %cst_86 : f32 to vector<8x128xf32>
    %261 = arith.addf %260, %259 : vector<8x128xf32>
    %262 = arith.divf %260, %261 : vector<8x128xf32>
    %263 = math.tanh %257 : vector<8x128xf32>
    %264 = arith.select %18, %263, %262 : vector<8x128xi1>, vector<8x128xf32>
    %265 = vector.extract_strided_slice %264 {offsets = [0, 0], sizes = [8, 32], strides = [1, 1]} : vector<8x128xf32> to vector<8x32xf32>
    %266 = vector.extract_strided_slice %264 {offsets = [0, 32], sizes = [8, 32], strides = [1, 1]} : vector<8x128xf32> to vector<8x32xf32>
    %267 = vector.extract_strided_slice %264 {offsets = [0, 64], sizes = [8, 32], strides = [1, 1]} : vector<8x128xf32> to vector<8x32xf32>
    %268 = vector.extract_strided_slice %264 {offsets = [0, 96], sizes = [8, 32], strides = [1, 1]} : vector<8x128xf32> to vector<8x32xf32>
    %269 = arith.mulf %266, %207 : vector<8x32xf32>
    %270 = arith.mulf %265, %267 : vector<8x32xf32>
    %271 = arith.addf %269, %270 : vector<8x32xf32>
    %272 = math.tanh %271 : vector<8x32xf32>
    %273 = arith.mulf %268, %272 : vector<8x32xf32>
    %c40 = arith.constant 40 : index
    %c0_87 = arith.constant 0 : index
    %274 = vector.load %arg13[%c40, %c0_87] : memref<64x128xf32, #tpu.memory_space<vmem>>, vector<8x128xf32>
    %c0_88 = arith.constant 0 : index
    %c0_89 = arith.constant 0 : index
    %275 = vector.load %arg2[%c0_88, %c0_89] : memref<32x128xf32, #tpu.memory_space<vmem>>, vector<32x128xf32>
    %cst_90 = arith.constant dense<0.000000e+00> : vector<8x128xf32>
    %276 = tpu.matmul %229, %275, %cst_90 {dimension_numbers = #tpu.dot_dimension_numbers<[1], [0], [0], [1], [0, 0, 1, 1], [], []>} : vector<8x32xf32>, vector<32x128xf32>, vector<8x128xf32> -> vector<8x128xf32>
    %277 = arith.addf %274, %276 : vector<8x128xf32>
    %278 = arith.negf %277 : vector<8x128xf32>
    %279 = math.exp %278 : vector<8x128xf32>
    %cst_91 = arith.constant 1.000000e+00 : f32
    %280 = vector.broadcast %cst_91 : f32 to vector<8x128xf32>
    %281 = arith.addf %280, %279 : vector<8x128xf32>
    %282 = arith.divf %280, %281 : vector<8x128xf32>
    %283 = math.tanh %277 : vector<8x128xf32>
    %284 = arith.select %18, %283, %282 : vector<8x128xi1>, vector<8x128xf32>
    %285 = vector.extract_strided_slice %284 {offsets = [0, 0], sizes = [8, 32], strides = [1, 1]} : vector<8x128xf32> to vector<8x32xf32>
    %286 = vector.extract_strided_slice %284 {offsets = [0, 32], sizes = [8, 32], strides = [1, 1]} : vector<8x128xf32> to vector<8x32xf32>
    %287 = vector.extract_strided_slice %284 {offsets = [0, 64], sizes = [8, 32], strides = [1, 1]} : vector<8x128xf32> to vector<8x32xf32>
    %288 = vector.extract_strided_slice %284 {offsets = [0, 96], sizes = [8, 32], strides = [1, 1]} : vector<8x128xf32> to vector<8x32xf32>
    %289 = arith.mulf %286, %227 : vector<8x32xf32>
    %290 = arith.mulf %285, %287 : vector<8x32xf32>
    %291 = arith.addf %289, %290 : vector<8x32xf32>
    %292 = math.tanh %291 : vector<8x32xf32>
    %293 = arith.mulf %288, %292 : vector<8x32xf32>
    %c0_92 = arith.constant 0 : index
    %c0_93 = arith.constant 0 : index
    %294 = vector.load %arg4[%c0_92, %c0_93] : memref<32x128xf32, #tpu.memory_space<vmem>>, vector<32x128xf32>
    %cst_94 = arith.constant dense<0.000000e+00> : vector<8x128xf32>
    %295 = tpu.matmul %229, %294, %cst_94 {dimension_numbers = #tpu.dot_dimension_numbers<[1], [0], [0], [1], [0, 0, 1, 1], [], []>} : vector<8x32xf32>, vector<32x128xf32>, vector<8x128xf32> -> vector<8x128xf32>
    %c0_95 = arith.constant 0 : index
    %c0_96 = arith.constant 0 : index
    %296 = vector.load %arg5[%c0_95, %c0_96] : memref<32x128xf32, #tpu.memory_space<vmem>>, vector<32x128xf32>
    %cst_97 = arith.constant dense<0.000000e+00> : vector<8x128xf32>
    %297 = tpu.matmul %251, %296, %cst_97 {dimension_numbers = #tpu.dot_dimension_numbers<[1], [0], [0], [1], [0, 0, 1, 1], [], []>} : vector<8x32xf32>, vector<32x128xf32>, vector<8x128xf32> -> vector<8x128xf32>
    %298 = arith.addf %295, %297 : vector<8x128xf32>
    %299 = arith.addf %298, %9 : vector<8x128xf32>
    %300 = arith.negf %299 : vector<8x128xf32>
    %301 = math.exp %300 : vector<8x128xf32>
    %cst_98 = arith.constant 1.000000e+00 : f32
    %302 = vector.broadcast %cst_98 : f32 to vector<8x128xf32>
    %303 = arith.addf %302, %301 : vector<8x128xf32>
    %304 = arith.divf %302, %303 : vector<8x128xf32>
    %305 = math.tanh %299 : vector<8x128xf32>
    %306 = arith.select %18, %305, %304 : vector<8x128xi1>, vector<8x128xf32>
    %307 = vector.extract_strided_slice %306 {offsets = [0, 0], sizes = [8, 32], strides = [1, 1]} : vector<8x128xf32> to vector<8x32xf32>
    %308 = vector.extract_strided_slice %306 {offsets = [0, 32], sizes = [8, 32], strides = [1, 1]} : vector<8x128xf32> to vector<8x32xf32>
    %309 = vector.extract_strided_slice %306 {offsets = [0, 64], sizes = [8, 32], strides = [1, 1]} : vector<8x128xf32> to vector<8x32xf32>
    %310 = vector.extract_strided_slice %306 {offsets = [0, 96], sizes = [8, 32], strides = [1, 1]} : vector<8x128xf32> to vector<8x32xf32>
    %311 = arith.mulf %308, %249 : vector<8x32xf32>
    %312 = arith.mulf %307, %309 : vector<8x32xf32>
    %313 = arith.addf %311, %312 : vector<8x32xf32>
    %314 = math.tanh %313 : vector<8x32xf32>
    %315 = arith.mulf %310, %314 : vector<8x32xf32>
    %c0_99 = arith.constant 0 : index
    %c0_100 = arith.constant 0 : index
    %316 = vector.load %arg7[%c0_99, %c0_100] : memref<32x128xf32, #tpu.memory_space<vmem>>, vector<32x128xf32>
    %cst_101 = arith.constant dense<0.000000e+00> : vector<8x128xf32>
    %317 = tpu.matmul %251, %316, %cst_101 {dimension_numbers = #tpu.dot_dimension_numbers<[1], [0], [0], [1], [0, 0, 1, 1], [], []>} : vector<8x32xf32>, vector<32x128xf32>, vector<8x128xf32> -> vector<8x128xf32>
    %c0_102 = arith.constant 0 : index
    %c0_103 = arith.constant 0 : index
    %318 = vector.load %arg8[%c0_102, %c0_103] : memref<32x128xf32, #tpu.memory_space<vmem>>, vector<32x128xf32>
    %cst_104 = arith.constant dense<0.000000e+00> : vector<8x128xf32>
    %319 = tpu.matmul %273, %318, %cst_104 {dimension_numbers = #tpu.dot_dimension_numbers<[1], [0], [0], [1], [0, 0, 1, 1], [], []>} : vector<8x32xf32>, vector<32x128xf32>, vector<8x128xf32> -> vector<8x128xf32>
    %320 = arith.addf %317, %319 : vector<8x128xf32>
    %321 = arith.addf %320, %12 : vector<8x128xf32>
    %322 = arith.negf %321 : vector<8x128xf32>
    %323 = math.exp %322 : vector<8x128xf32>
    %cst_105 = arith.constant 1.000000e+00 : f32
    %324 = vector.broadcast %cst_105 : f32 to vector<8x128xf32>
    %325 = arith.addf %324, %323 : vector<8x128xf32>
    %326 = arith.divf %324, %325 : vector<8x128xf32>
    %327 = math.tanh %321 : vector<8x128xf32>
    %328 = arith.select %18, %327, %326 : vector<8x128xi1>, vector<8x128xf32>
    %329 = vector.extract_strided_slice %328 {offsets = [0, 0], sizes = [8, 32], strides = [1, 1]} : vector<8x128xf32> to vector<8x32xf32>
    %330 = vector.extract_strided_slice %328 {offsets = [0, 32], sizes = [8, 32], strides = [1, 1]} : vector<8x128xf32> to vector<8x32xf32>
    %331 = vector.extract_strided_slice %328 {offsets = [0, 64], sizes = [8, 32], strides = [1, 1]} : vector<8x128xf32> to vector<8x32xf32>
    %332 = vector.extract_strided_slice %328 {offsets = [0, 96], sizes = [8, 32], strides = [1, 1]} : vector<8x128xf32> to vector<8x32xf32>
    %333 = arith.mulf %330, %271 : vector<8x32xf32>
    %334 = arith.mulf %329, %331 : vector<8x32xf32>
    %335 = arith.addf %333, %334 : vector<8x32xf32>
    %336 = math.tanh %335 : vector<8x32xf32>
    %337 = arith.mulf %332, %336 : vector<8x32xf32>
    %c48 = arith.constant 48 : index
    %c0_106 = arith.constant 0 : index
    %338 = vector.load %arg13[%c48, %c0_106] : memref<64x128xf32, #tpu.memory_space<vmem>>, vector<8x128xf32>
    %c0_107 = arith.constant 0 : index
    %c0_108 = arith.constant 0 : index
    %339 = vector.load %arg2[%c0_107, %c0_108] : memref<32x128xf32, #tpu.memory_space<vmem>>, vector<32x128xf32>
    %cst_109 = arith.constant dense<0.000000e+00> : vector<8x128xf32>
    %340 = tpu.matmul %293, %339, %cst_109 {dimension_numbers = #tpu.dot_dimension_numbers<[1], [0], [0], [1], [0, 0, 1, 1], [], []>} : vector<8x32xf32>, vector<32x128xf32>, vector<8x128xf32> -> vector<8x128xf32>
    %341 = arith.addf %338, %340 : vector<8x128xf32>
    %342 = arith.negf %341 : vector<8x128xf32>
    %343 = math.exp %342 : vector<8x128xf32>
    %cst_110 = arith.constant 1.000000e+00 : f32
    %344 = vector.broadcast %cst_110 : f32 to vector<8x128xf32>
    %345 = arith.addf %344, %343 : vector<8x128xf32>
    %346 = arith.divf %344, %345 : vector<8x128xf32>
    %347 = math.tanh %341 : vector<8x128xf32>
    %348 = arith.select %18, %347, %346 : vector<8x128xi1>, vector<8x128xf32>
    %349 = vector.extract_strided_slice %348 {offsets = [0, 0], sizes = [8, 32], strides = [1, 1]} : vector<8x128xf32> to vector<8x32xf32>
    %350 = vector.extract_strided_slice %348 {offsets = [0, 32], sizes = [8, 32], strides = [1, 1]} : vector<8x128xf32> to vector<8x32xf32>
    %351 = vector.extract_strided_slice %348 {offsets = [0, 64], sizes = [8, 32], strides = [1, 1]} : vector<8x128xf32> to vector<8x32xf32>
    %352 = vector.extract_strided_slice %348 {offsets = [0, 96], sizes = [8, 32], strides = [1, 1]} : vector<8x128xf32> to vector<8x32xf32>
    %353 = arith.mulf %350, %291 : vector<8x32xf32>
    %354 = arith.mulf %349, %351 : vector<8x32xf32>
    %355 = arith.addf %353, %354 : vector<8x32xf32>
    %356 = math.tanh %355 : vector<8x32xf32>
    %357 = arith.mulf %352, %356 : vector<8x32xf32>
    %c0_111 = arith.constant 0 : index
    %c0_112 = arith.constant 0 : index
    %358 = vector.load %arg4[%c0_111, %c0_112] : memref<32x128xf32, #tpu.memory_space<vmem>>, vector<32x128xf32>
    %cst_113 = arith.constant dense<0.000000e+00> : vector<8x128xf32>
    %359 = tpu.matmul %293, %358, %cst_113 {dimension_numbers = #tpu.dot_dimension_numbers<[1], [0], [0], [1], [0, 0, 1, 1], [], []>} : vector<8x32xf32>, vector<32x128xf32>, vector<8x128xf32> -> vector<8x128xf32>
    %c0_114 = arith.constant 0 : index
    %c0_115 = arith.constant 0 : index
    %360 = vector.load %arg5[%c0_114, %c0_115] : memref<32x128xf32, #tpu.memory_space<vmem>>, vector<32x128xf32>
    %cst_116 = arith.constant dense<0.000000e+00> : vector<8x128xf32>
    %361 = tpu.matmul %315, %360, %cst_116 {dimension_numbers = #tpu.dot_dimension_numbers<[1], [0], [0], [1], [0, 0, 1, 1], [], []>} : vector<8x32xf32>, vector<32x128xf32>, vector<8x128xf32> -> vector<8x128xf32>
    %362 = arith.addf %359, %361 : vector<8x128xf32>
    %363 = arith.addf %362, %9 : vector<8x128xf32>
    %364 = arith.negf %363 : vector<8x128xf32>
    %365 = math.exp %364 : vector<8x128xf32>
    %cst_117 = arith.constant 1.000000e+00 : f32
    %366 = vector.broadcast %cst_117 : f32 to vector<8x128xf32>
    %367 = arith.addf %366, %365 : vector<8x128xf32>
    %368 = arith.divf %366, %367 : vector<8x128xf32>
    %369 = math.tanh %363 : vector<8x128xf32>
    %370 = arith.select %18, %369, %368 : vector<8x128xi1>, vector<8x128xf32>
    %371 = vector.extract_strided_slice %370 {offsets = [0, 0], sizes = [8, 32], strides = [1, 1]} : vector<8x128xf32> to vector<8x32xf32>
    %372 = vector.extract_strided_slice %370 {offsets = [0, 32], sizes = [8, 32], strides = [1, 1]} : vector<8x128xf32> to vector<8x32xf32>
    %373 = vector.extract_strided_slice %370 {offsets = [0, 64], sizes = [8, 32], strides = [1, 1]} : vector<8x128xf32> to vector<8x32xf32>
    %374 = vector.extract_strided_slice %370 {offsets = [0, 96], sizes = [8, 32], strides = [1, 1]} : vector<8x128xf32> to vector<8x32xf32>
    %375 = arith.mulf %372, %313 : vector<8x32xf32>
    %376 = arith.mulf %371, %373 : vector<8x32xf32>
    %377 = arith.addf %375, %376 : vector<8x32xf32>
    %378 = math.tanh %377 : vector<8x32xf32>
    %379 = arith.mulf %374, %378 : vector<8x32xf32>
    %c0_118 = arith.constant 0 : index
    %c0_119 = arith.constant 0 : index
    %380 = vector.load %arg7[%c0_118, %c0_119] : memref<32x128xf32, #tpu.memory_space<vmem>>, vector<32x128xf32>
    %cst_120 = arith.constant dense<0.000000e+00> : vector<8x128xf32>
    %381 = tpu.matmul %315, %380, %cst_120 {dimension_numbers = #tpu.dot_dimension_numbers<[1], [0], [0], [1], [0, 0, 1, 1], [], []>} : vector<8x32xf32>, vector<32x128xf32>, vector<8x128xf32> -> vector<8x128xf32>
    %c0_121 = arith.constant 0 : index
    %c0_122 = arith.constant 0 : index
    %382 = vector.load %arg8[%c0_121, %c0_122] : memref<32x128xf32, #tpu.memory_space<vmem>>, vector<32x128xf32>
    %cst_123 = arith.constant dense<0.000000e+00> : vector<8x128xf32>
    %383 = tpu.matmul %337, %382, %cst_123 {dimension_numbers = #tpu.dot_dimension_numbers<[1], [0], [0], [1], [0, 0, 1, 1], [], []>} : vector<8x32xf32>, vector<32x128xf32>, vector<8x128xf32> -> vector<8x128xf32>
    %384 = arith.addf %381, %383 : vector<8x128xf32>
    %385 = arith.addf %384, %12 : vector<8x128xf32>
    %386 = arith.negf %385 : vector<8x128xf32>
    %387 = math.exp %386 : vector<8x128xf32>
    %cst_124 = arith.constant 1.000000e+00 : f32
    %388 = vector.broadcast %cst_124 : f32 to vector<8x128xf32>
    %389 = arith.addf %388, %387 : vector<8x128xf32>
    %390 = arith.divf %388, %389 : vector<8x128xf32>
    %391 = math.tanh %385 : vector<8x128xf32>
    %392 = arith.select %18, %391, %390 : vector<8x128xi1>, vector<8x128xf32>
    %393 = vector.extract_strided_slice %392 {offsets = [0, 0], sizes = [8, 32], strides = [1, 1]} : vector<8x128xf32> to vector<8x32xf32>
    %394 = vector.extract_strided_slice %392 {offsets = [0, 32], sizes = [8, 32], strides = [1, 1]} : vector<8x128xf32> to vector<8x32xf32>
    %395 = vector.extract_strided_slice %392 {offsets = [0, 64], sizes = [8, 32], strides = [1, 1]} : vector<8x128xf32> to vector<8x32xf32>
    %396 = vector.extract_strided_slice %392 {offsets = [0, 96], sizes = [8, 32], strides = [1, 1]} : vector<8x128xf32> to vector<8x32xf32>
    %397 = arith.mulf %394, %335 : vector<8x32xf32>
    %398 = arith.mulf %393, %395 : vector<8x32xf32>
    %399 = arith.addf %397, %398 : vector<8x32xf32>
    %400 = math.tanh %399 : vector<8x32xf32>
    %401 = arith.mulf %396, %400 : vector<8x32xf32>
    %c56 = arith.constant 56 : index
    %c0_125 = arith.constant 0 : index
    %402 = vector.load %arg13[%c56, %c0_125] : memref<64x128xf32, #tpu.memory_space<vmem>>, vector<8x128xf32>
    %c0_126 = arith.constant 0 : index
    %c0_127 = arith.constant 0 : index
    %403 = vector.load %arg2[%c0_126, %c0_127] : memref<32x128xf32, #tpu.memory_space<vmem>>, vector<32x128xf32>
    %cst_128 = arith.constant dense<0.000000e+00> : vector<8x128xf32>
    %404 = tpu.matmul %357, %403, %cst_128 {dimension_numbers = #tpu.dot_dimension_numbers<[1], [0], [0], [1], [0, 0, 1, 1], [], []>} : vector<8x32xf32>, vector<32x128xf32>, vector<8x128xf32> -> vector<8x128xf32>
    %405 = arith.addf %402, %404 : vector<8x128xf32>
    %406 = arith.negf %405 : vector<8x128xf32>
    %407 = math.exp %406 : vector<8x128xf32>
    %cst_129 = arith.constant 1.000000e+00 : f32
    %408 = vector.broadcast %cst_129 : f32 to vector<8x128xf32>
    %409 = arith.addf %408, %407 : vector<8x128xf32>
    %410 = arith.divf %408, %409 : vector<8x128xf32>
    %411 = math.tanh %405 : vector<8x128xf32>
    %412 = arith.select %18, %411, %410 : vector<8x128xi1>, vector<8x128xf32>
    %413 = vector.extract_strided_slice %412 {offsets = [0, 0], sizes = [8, 32], strides = [1, 1]} : vector<8x128xf32> to vector<8x32xf32>
    %414 = vector.extract_strided_slice %412 {offsets = [0, 32], sizes = [8, 32], strides = [1, 1]} : vector<8x128xf32> to vector<8x32xf32>
    %415 = vector.extract_strided_slice %412 {offsets = [0, 64], sizes = [8, 32], strides = [1, 1]} : vector<8x128xf32> to vector<8x32xf32>
    %416 = vector.extract_strided_slice %412 {offsets = [0, 96], sizes = [8, 32], strides = [1, 1]} : vector<8x128xf32> to vector<8x32xf32>
    %417 = arith.mulf %414, %355 : vector<8x32xf32>
    %418 = arith.mulf %413, %415 : vector<8x32xf32>
    %419 = arith.addf %417, %418 : vector<8x32xf32>
    %420 = math.tanh %419 : vector<8x32xf32>
    %421 = arith.mulf %416, %420 : vector<8x32xf32>
    %c0_130 = arith.constant 0 : index
    %c0_131 = arith.constant 0 : index
    %422 = vector.load %arg4[%c0_130, %c0_131] : memref<32x128xf32, #tpu.memory_space<vmem>>, vector<32x128xf32>
    %cst_132 = arith.constant dense<0.000000e+00> : vector<8x128xf32>
    %423 = tpu.matmul %357, %422, %cst_132 {dimension_numbers = #tpu.dot_dimension_numbers<[1], [0], [0], [1], [0, 0, 1, 1], [], []>} : vector<8x32xf32>, vector<32x128xf32>, vector<8x128xf32> -> vector<8x128xf32>
    %c0_133 = arith.constant 0 : index
    %c0_134 = arith.constant 0 : index
    %424 = vector.load %arg5[%c0_133, %c0_134] : memref<32x128xf32, #tpu.memory_space<vmem>>, vector<32x128xf32>
    %cst_135 = arith.constant dense<0.000000e+00> : vector<8x128xf32>
    %425 = tpu.matmul %379, %424, %cst_135 {dimension_numbers = #tpu.dot_dimension_numbers<[1], [0], [0], [1], [0, 0, 1, 1], [], []>} : vector<8x32xf32>, vector<32x128xf32>, vector<8x128xf32> -> vector<8x128xf32>
    %426 = arith.addf %423, %425 : vector<8x128xf32>
    %427 = arith.addf %426, %9 : vector<8x128xf32>
    %428 = arith.negf %427 : vector<8x128xf32>
    %429 = math.exp %428 : vector<8x128xf32>
    %cst_136 = arith.constant 1.000000e+00 : f32
    %430 = vector.broadcast %cst_136 : f32 to vector<8x128xf32>
    %431 = arith.addf %430, %429 : vector<8x128xf32>
    %432 = arith.divf %430, %431 : vector<8x128xf32>
    %433 = math.tanh %427 : vector<8x128xf32>
    %434 = arith.select %18, %433, %432 : vector<8x128xi1>, vector<8x128xf32>
    %435 = vector.extract_strided_slice %434 {offsets = [0, 0], sizes = [8, 32], strides = [1, 1]} : vector<8x128xf32> to vector<8x32xf32>
    %436 = vector.extract_strided_slice %434 {offsets = [0, 32], sizes = [8, 32], strides = [1, 1]} : vector<8x128xf32> to vector<8x32xf32>
    %437 = vector.extract_strided_slice %434 {offsets = [0, 64], sizes = [8, 32], strides = [1, 1]} : vector<8x128xf32> to vector<8x32xf32>
    %438 = vector.extract_strided_slice %434 {offsets = [0, 96], sizes = [8, 32], strides = [1, 1]} : vector<8x128xf32> to vector<8x32xf32>
    %439 = arith.mulf %436, %377 : vector<8x32xf32>
    %440 = arith.mulf %435, %437 : vector<8x32xf32>
    %441 = arith.addf %439, %440 : vector<8x32xf32>
    %442 = math.tanh %441 : vector<8x32xf32>
    %443 = arith.mulf %438, %442 : vector<8x32xf32>
    %c0_137 = arith.constant 0 : index
    %c0_138 = arith.constant 0 : index
    %444 = vector.load %arg7[%c0_137, %c0_138] : memref<32x128xf32, #tpu.memory_space<vmem>>, vector<32x128xf32>
    %cst_139 = arith.constant dense<0.000000e+00> : vector<8x128xf32>
    %445 = tpu.matmul %379, %444, %cst_139 {dimension_numbers = #tpu.dot_dimension_numbers<[1], [0], [0], [1], [0, 0, 1, 1], [], []>} : vector<8x32xf32>, vector<32x128xf32>, vector<8x128xf32> -> vector<8x128xf32>
    %c0_140 = arith.constant 0 : index
    %c0_141 = arith.constant 0 : index
    %446 = vector.load %arg8[%c0_140, %c0_141] : memref<32x128xf32, #tpu.memory_space<vmem>>, vector<32x128xf32>
    %cst_142 = arith.constant dense<0.000000e+00> : vector<8x128xf32>
    %447 = tpu.matmul %401, %446, %cst_142 {dimension_numbers = #tpu.dot_dimension_numbers<[1], [0], [0], [1], [0, 0, 1, 1], [], []>} : vector<8x32xf32>, vector<32x128xf32>, vector<8x128xf32> -> vector<8x128xf32>
    %448 = arith.addf %445, %447 : vector<8x128xf32>
    %449 = arith.addf %448, %12 : vector<8x128xf32>
    %450 = arith.negf %449 : vector<8x128xf32>
    %451 = math.exp %450 : vector<8x128xf32>
    %cst_143 = arith.constant 1.000000e+00 : f32
    %452 = vector.broadcast %cst_143 : f32 to vector<8x128xf32>
    %453 = arith.addf %452, %451 : vector<8x128xf32>
    %454 = arith.divf %452, %453 : vector<8x128xf32>
    %455 = math.tanh %449 : vector<8x128xf32>
    %456 = arith.select %18, %455, %454 : vector<8x128xi1>, vector<8x128xf32>
    %457 = vector.extract_strided_slice %456 {offsets = [0, 0], sizes = [8, 32], strides = [1, 1]} : vector<8x128xf32> to vector<8x32xf32>
    %458 = vector.extract_strided_slice %456 {offsets = [0, 32], sizes = [8, 32], strides = [1, 1]} : vector<8x128xf32> to vector<8x32xf32>
    %459 = vector.extract_strided_slice %456 {offsets = [0, 64], sizes = [8, 32], strides = [1, 1]} : vector<8x128xf32> to vector<8x32xf32>
    %460 = vector.extract_strided_slice %456 {offsets = [0, 96], sizes = [8, 32], strides = [1, 1]} : vector<8x128xf32> to vector<8x32xf32>
    %461 = arith.mulf %458, %399 : vector<8x32xf32>
    %462 = arith.mulf %457, %459 : vector<8x32xf32>
    %463 = arith.addf %461, %462 : vector<8x32xf32>
    %464 = math.tanh %463 : vector<8x32xf32>
    %465 = arith.mulf %460, %464 : vector<8x32xf32>
    %c0_144 = arith.constant 0 : index
    %c0_145 = arith.constant 0 : index
    %466 = vector.load %arg4[%c0_144, %c0_145] : memref<32x128xf32, #tpu.memory_space<vmem>>, vector<32x128xf32>
    %cst_146 = arith.constant dense<0.000000e+00> : vector<8x128xf32>
    %467 = tpu.matmul %421, %466, %cst_146 {dimension_numbers = #tpu.dot_dimension_numbers<[1], [0], [0], [1], [0, 0, 1, 1], [], []>} : vector<8x32xf32>, vector<32x128xf32>, vector<8x128xf32> -> vector<8x128xf32>
    %c0_147 = arith.constant 0 : index
    %c0_148 = arith.constant 0 : index
    %468 = vector.load %arg5[%c0_147, %c0_148] : memref<32x128xf32, #tpu.memory_space<vmem>>, vector<32x128xf32>
    %cst_149 = arith.constant dense<0.000000e+00> : vector<8x128xf32>
    %469 = tpu.matmul %443, %468, %cst_149 {dimension_numbers = #tpu.dot_dimension_numbers<[1], [0], [0], [1], [0, 0, 1, 1], [], []>} : vector<8x32xf32>, vector<32x128xf32>, vector<8x128xf32> -> vector<8x128xf32>
    %470 = arith.addf %467, %469 : vector<8x128xf32>
    %471 = arith.addf %470, %9 : vector<8x128xf32>
    %472 = arith.negf %471 : vector<8x128xf32>
    %473 = math.exp %472 : vector<8x128xf32>
    %cst_150 = arith.constant 1.000000e+00 : f32
    %474 = vector.broadcast %cst_150 : f32 to vector<8x128xf32>
    %475 = arith.addf %474, %473 : vector<8x128xf32>
    %476 = arith.divf %474, %475 : vector<8x128xf32>
    %477 = math.tanh %471 : vector<8x128xf32>
    %478 = arith.select %18, %477, %476 : vector<8x128xi1>, vector<8x128xf32>
    %479 = vector.extract_strided_slice %478 {offsets = [0, 0], sizes = [8, 32], strides = [1, 1]} : vector<8x128xf32> to vector<8x32xf32>
    %480 = vector.extract_strided_slice %478 {offsets = [0, 32], sizes = [8, 32], strides = [1, 1]} : vector<8x128xf32> to vector<8x32xf32>
    %481 = vector.extract_strided_slice %478 {offsets = [0, 64], sizes = [8, 32], strides = [1, 1]} : vector<8x128xf32> to vector<8x32xf32>
    %482 = vector.extract_strided_slice %478 {offsets = [0, 96], sizes = [8, 32], strides = [1, 1]} : vector<8x128xf32> to vector<8x32xf32>
    %483 = arith.mulf %480, %441 : vector<8x32xf32>
    %484 = arith.mulf %479, %481 : vector<8x32xf32>
    %485 = arith.addf %483, %484 : vector<8x32xf32>
    %486 = math.tanh %485 : vector<8x32xf32>
    %487 = arith.mulf %482, %486 : vector<8x32xf32>
    %c0_151 = arith.constant 0 : index
    %c0_152 = arith.constant 0 : index
    %488 = vector.load %arg7[%c0_151, %c0_152] : memref<32x128xf32, #tpu.memory_space<vmem>>, vector<32x128xf32>
    %cst_153 = arith.constant dense<0.000000e+00> : vector<8x128xf32>
    %489 = tpu.matmul %443, %488, %cst_153 {dimension_numbers = #tpu.dot_dimension_numbers<[1], [0], [0], [1], [0, 0, 1, 1], [], []>} : vector<8x32xf32>, vector<32x128xf32>, vector<8x128xf32> -> vector<8x128xf32>
    %c0_154 = arith.constant 0 : index
    %c0_155 = arith.constant 0 : index
    %490 = vector.load %arg8[%c0_154, %c0_155] : memref<32x128xf32, #tpu.memory_space<vmem>>, vector<32x128xf32>
    %cst_156 = arith.constant dense<0.000000e+00> : vector<8x128xf32>
    %491 = tpu.matmul %465, %490, %cst_156 {dimension_numbers = #tpu.dot_dimension_numbers<[1], [0], [0], [1], [0, 0, 1, 1], [], []>} : vector<8x32xf32>, vector<32x128xf32>, vector<8x128xf32> -> vector<8x128xf32>
    %492 = arith.addf %489, %491 : vector<8x128xf32>
    %493 = arith.addf %492, %12 : vector<8x128xf32>
    %494 = arith.negf %493 : vector<8x128xf32>
    %495 = math.exp %494 : vector<8x128xf32>
    %cst_157 = arith.constant 1.000000e+00 : f32
    %496 = vector.broadcast %cst_157 : f32 to vector<8x128xf32>
    %497 = arith.addf %496, %495 : vector<8x128xf32>
    %498 = arith.divf %496, %497 : vector<8x128xf32>
    %499 = math.tanh %493 : vector<8x128xf32>
    %500 = arith.select %18, %499, %498 : vector<8x128xi1>, vector<8x128xf32>
    %501 = vector.extract_strided_slice %500 {offsets = [0, 0], sizes = [8, 32], strides = [1, 1]} : vector<8x128xf32> to vector<8x32xf32>
    %502 = vector.extract_strided_slice %500 {offsets = [0, 32], sizes = [8, 32], strides = [1, 1]} : vector<8x128xf32> to vector<8x32xf32>
    %503 = vector.extract_strided_slice %500 {offsets = [0, 64], sizes = [8, 32], strides = [1, 1]} : vector<8x128xf32> to vector<8x32xf32>
    %504 = vector.extract_strided_slice %500 {offsets = [0, 96], sizes = [8, 32], strides = [1, 1]} : vector<8x128xf32> to vector<8x32xf32>
    %505 = arith.mulf %502, %463 : vector<8x32xf32>
    %506 = arith.mulf %501, %503 : vector<8x32xf32>
    %507 = arith.addf %505, %506 : vector<8x32xf32>
    %508 = math.tanh %507 : vector<8x32xf32>
    %509 = arith.mulf %504, %508 : vector<8x32xf32>
    %c0_158 = arith.constant 0 : index
    %c0_159 = arith.constant 0 : index
    %510 = vector.load %arg7[%c0_158, %c0_159] : memref<32x128xf32, #tpu.memory_space<vmem>>, vector<32x128xf32>
    %cst_160 = arith.constant dense<0.000000e+00> : vector<8x128xf32>
    %511 = tpu.matmul %487, %510, %cst_160 {dimension_numbers = #tpu.dot_dimension_numbers<[1], [0], [0], [1], [0, 0, 1, 1], [], []>} : vector<8x32xf32>, vector<32x128xf32>, vector<8x128xf32> -> vector<8x128xf32>
    %c0_161 = arith.constant 0 : index
    %c0_162 = arith.constant 0 : index
    %512 = vector.load %arg8[%c0_161, %c0_162] : memref<32x128xf32, #tpu.memory_space<vmem>>, vector<32x128xf32>
    %cst_163 = arith.constant dense<0.000000e+00> : vector<8x128xf32>
    %513 = tpu.matmul %509, %512, %cst_163 {dimension_numbers = #tpu.dot_dimension_numbers<[1], [0], [0], [1], [0, 0, 1, 1], [], []>} : vector<8x32xf32>, vector<32x128xf32>, vector<8x128xf32> -> vector<8x128xf32>
    %514 = arith.addf %511, %513 : vector<8x128xf32>
    %515 = arith.addf %514, %12 : vector<8x128xf32>
    %516 = arith.negf %515 : vector<8x128xf32>
    %517 = math.exp %516 : vector<8x128xf32>
    %cst_164 = arith.constant 1.000000e+00 : f32
    %518 = vector.broadcast %cst_164 : f32 to vector<8x128xf32>
    %519 = arith.addf %518, %517 : vector<8x128xf32>
    %520 = arith.divf %518, %519 : vector<8x128xf32>
    %521 = math.tanh %515 : vector<8x128xf32>
    %522 = arith.select %18, %521, %520 : vector<8x128xi1>, vector<8x128xf32>
    %523 = vector.extract_strided_slice %522 {offsets = [0, 0], sizes = [8, 32], strides = [1, 1]} : vector<8x128xf32> to vector<8x32xf32>
    %524 = vector.extract_strided_slice %522 {offsets = [0, 32], sizes = [8, 32], strides = [1, 1]} : vector<8x128xf32> to vector<8x32xf32>
    %525 = vector.extract_strided_slice %522 {offsets = [0, 64], sizes = [8, 32], strides = [1, 1]} : vector<8x128xf32> to vector<8x32xf32>
    %526 = vector.extract_strided_slice %522 {offsets = [0, 96], sizes = [8, 32], strides = [1, 1]} : vector<8x128xf32> to vector<8x32xf32>
    %527 = arith.mulf %524, %507 : vector<8x32xf32>
    %528 = arith.mulf %523, %525 : vector<8x32xf32>
    %529 = arith.addf %527, %528 : vector<8x32xf32>
    %530 = math.tanh %529 : vector<8x32xf32>
    %531 = arith.mulf %526, %530 : vector<8x32xf32>
    %c0_165 = arith.constant 0 : index
    %c0_166 = arith.constant 0 : index
    %532 = vector.load %arg10[%c0_165, %c0_166] : memref<32x8xf32, #tpu.memory_space<vmem>>, vector<32x8xf32>
    %cst_167 = arith.constant dense<0.000000e+00> : vector<8x8xf32>
    %533 = tpu.matmul %531, %532, %cst_167 {dimension_numbers = #tpu.dot_dimension_numbers<[1], [0], [0], [1], [0, 0, 1, 1], [], []>} : vector<8x32xf32>, vector<32x8xf32>, vector<8x8xf32> -> vector<8x8xf32>
    %c0_168 = arith.constant 0 : index
    %c0_169 = arith.constant 0 : index
    %534 = vector.load %arg11[%c0_168, %c0_169] : memref<1x8xf32, #tpu.memory_space<vmem>>, vector<1x8xf32>
    %535 = vector.broadcast %534 : vector<1x8xf32> to vector<8x8xf32>
    %536 = arith.addf %533, %535 : vector<8x8xf32>
    %c0_170 = arith.constant 0 : index
    %c0_171 = arith.constant 0 : index
    %537 = vector.load %arg12[%c0_170, %c0_171] : memref<8x8xf32, #tpu.memory_space<vmem>>, vector<8x8xf32>
    tpu.vector_store %arg12[%c0_170, %c0_171], %536 {strides = array<i32>} : memref<8x8xf32, #tpu.memory_space<vmem>>, vector<8x8xf32>,
    return
  }
}

</mosaic_0001>

<llo_original>
// kernel: tpu_custom_call.1
$region0: #{tpu_custom_call.1}
  #allocation0 [shape = 'u32[]', space=smem, size = 0x4, offset = 0x4, fixed_abs, tag = 'smem constant byte address 0x4 - core index']
  #allocation1 [shape = 'u32[72,128]{1,0:T(1,128)}', space=vmem, size = 0x9000, scoped, tag = 'internal scratch']
  #allocation2 [shape = 'f32[64,128]{1,0:T(8,128)}', space=vmem, size = 0x8000, scoped, tag = 'scratch operand']
  %s0 = inlined_call_operand.vmem [shape: f32[64,16], index: 0, kind: input, shape index: {}]
  %s1 = inlined_call_operand.hbm [shape: f32[16,128], index: 1, kind: input, shape index: {}]
  %s2 = inlined_call_operand.vmem [shape: f32[32,128], index: 2, kind: input, shape index: {}]
  %s3 = inlined_call_operand.vmem [shape: f32[1,128], index: 3, kind: input, shape index: {}]
  %s4 = inlined_call_operand.vmem [shape: f32[32,128], index: 4, kind: input, shape index: {}]
  %s5 = inlined_call_operand.vmem [shape: f32[32,128], index: 5, kind: input, shape index: {}]
  %s6 = inlined_call_operand.vmem [shape: f32[1,128], index: 6, kind: input, shape index: {}]
  %s7 = inlined_call_operand.hbm [shape: f32[32,128], index: 7, kind: input, shape index: {}]
  %s8 = inlined_call_operand.hbm [shape: f32[32,128], index: 8, kind: input, shape index: {}]
  %s9 = inlined_call_operand.vmem [shape: f32[1,128], index: 9, kind: input, shape index: {}]
  %s10 = inlined_call_operand.vmem [shape: f32[32,8], index: 10, kind: input, shape index: {}]
  %s11 = inlined_call_operand.vmem [shape: f32[1,8], index: 11, kind: input, shape index: {}]
  %s12 = inlined_call_operand.hbm [shape: f32[8,8], index: 12, kind: output, shape index: {}]
  %s13 = sld [smem:[#allocation0]]
  $region70: #{tpu_custom_call.1} parent=0
    _
  %s15 = ssub.s32 1, %s13
  %s16 = scalar_select 0, %s15, %s13
  $region1: #{tpu_custom_call.1} parent=0
    #allocation3 [shape = 'u8[8192]{0}', space=vmem, size = 0x2000, scoped, tag = 'input window, operand 1, single buffered']
    #allocation4 [shape = 's32[1]{0}', space=sflag, size = 0x4, scoped, tag = 'scoped memory for tpu_custom_call.1']
    #allocation5 [shape = 's32[1]{0}', space=sflag, size = 0x4, scoped, tag = 'scoped memory for tpu_custom_call.1']
    #allocation6 [shape = 'u8[16384]{0}', space=vmem, size = 0x4000, scoped, tag = 'input window, operand 7, single buffered']
    #allocation7 [shape = 's32[1]{0}', space=sflag, size = 0x4, scoped, tag = 'scoped memory for tpu_custom_call.1']
    #allocation8 [shape = 'u8[16384]{0}', space=vmem, size = 0x4000, scoped, tag = 'input window, operand 8, single buffered']
    #allocation9 [shape = 'u8[4096]{0}', space=vmem, size = 0x1000, scoped, tag = 'output window, operand 0, single buffered']
    %17 = vsyncpa [#allocation4], 0
    %18 = vsyncpa [#allocation7], 0
    %19 = vsyncpa [#allocation5], 0
    // Predicated region
    $region2: #{tpu_custom_call.1} parent=1 // pred_check
      _
    $region3: #{tpu_custom_call.1} parent=1 // pred_check_branch
      %21 = sbr.rel (0) target = $region5
    $region4: #{tpu_custom_call.1} parent=1 // pred_region
      _
    $region5: #{tpu_custom_call.1} parent=1 // pred_fallthru
      _
    // Predicated region
    $region6: #{tpu_custom_call.1} parent=1 // pred_check
      _
    $region7: #{tpu_custom_call.1} parent=1 // pred_check_branch
      %23 = sbr.rel (0) target = $region9
    $region8: #{tpu_custom_call.1} parent=1 // pred_region
      %25 = vsyncadd [#allocation4], 0
      %s26 = sshll.u32 %s1, 4
      %s27 = int_to_ptr.hbm [resolvable:$true] %s26
      %s28 = sshll.u32 [#allocation3], 4
      %s29 = int_to_ptr.vmem [resolvable:$true] %s28
      %34 = dma.hbm_to_vmem [thread:$0]  %s27, 256, %s29, [#allocation4], 128, 128, 8
    $region9: #{tpu_custom_call.1} parent=1 // pred_fallthru
      _
    // Predicated region
    $region10: #{tpu_custom_call.1} parent=1 // pred_check
      _
    $region11: #{tpu_custom_call.1} parent=1 // pred_check_branch
      %36 = sbr.rel (0) target = $region13
    $region12: #{tpu_custom_call.1} parent=1 // pred_region
      _
    $region13: #{tpu_custom_call.1} parent=1 // pred_fallthru
      _
    // Predicated region
    $region14: #{tpu_custom_call.1} parent=1 // pred_check
      _
    $region15: #{tpu_custom_call.1} parent=1 // pred_check_branch
      %38 = sbr.rel (0) target = $region17
    $region16: #{tpu_custom_call.1} parent=1 // pred_region
      _
    $region17: #{tpu_custom_call.1} parent=1 // pred_fallthru
      _
    // Predicated region
    $region18: #{tpu_custom_call.1} parent=1 // pred_check
      _
    $region19: #{tpu_custom_call.1} parent=1 // pred_check_branch
      %40 = sbr.rel (0) target = $region21
    $region20: #{tpu_custom_call.1} parent=1 // pred_region
      _
    $region21: #{tpu_custom_call.1} parent=1 // pred_fallthru
      _
    // Predicated region
    $region22: #{tpu_custom_call.1} parent=1 // pred_check
      _
    $region23: #{tpu_custom_call.1} parent=1 // pred_check_branch
      %42 = sbr.rel (0) target = $region25
    $region24: #{tpu_custom_call.1} parent=1 // pred_region
      _
    $region25: #{tpu_custom_call.1} parent=1 // pred_fallthru
      _
    // Predicated region
    $region26: #{tpu_custom_call.1} parent=1 // pred_check
      _
    $region27: #{tpu_custom_call.1} parent=1 // pred_check_branch
      %44 = sbr.rel (0) target = $region29
    $region28: #{tpu_custom_call.1} parent=1 // pred_region
      _
    $region29: #{tpu_custom_call.1} parent=1 // pred_fallthru
      _
    // Predicated region
    $region30: #{tpu_custom_call.1} parent=1 // pred_check
      _
    $region31: #{tpu_custom_call.1} parent=1 // pred_check_branch
      %46 = sbr.rel (0) target = $region33
    $region32: #{tpu_custom_call.1} parent=1 // pred_region
      %48 = vsyncadd [#allocation7], 0
      %s49 = sshll.u32 %s7, 4
      %s50 = int_to_ptr.hbm [resolvable:$true] %s49
      %s51 = sshll.u32 [#allocation6], 4
      %s52 = int_to_ptr.vmem [resolvable:$true] %s51
      %57 = dma.hbm_to_vmem [thread:$0]  %s50, 512, %s52, [#allocation7], 128, 128, 8
    $region33: #{tpu_custom_call.1} parent=1 // pred_fallthru
      _
    // Predicated region
    $region34: #{tpu_custom_call.1} parent=1 // pred_check
      _
    $region35: #{tpu_custom_call.1} parent=1 // pred_check_branch
      %59 = sbr.rel (0) target = $region37
    $region36: #{tpu_custom_call.1} parent=1 // pred_region
      %61 = vsyncadd [#allocation7], 0
      %s62 = sshll.u32 %s8, 4
      %s63 = int_to_ptr.hbm [resolvable:$true] %s62
      %s64 = sshll.u32 [#allocation8], 4
      %s65 = int_to_ptr.vmem [resolvable:$true] %s64
      %70 = dma.hbm_to_vmem [thread:$0]  %s63, 512, %s65, [#allocation7], 128, 128, 8
    $region37: #{tpu_custom_call.1} parent=1 // pred_fallthru
      _
    // Predicated region
    $region38: #{tpu_custom_call.1} parent=1 // pred_check
      _
    $region39: #{tpu_custom_call.1} parent=1 // pred_check_branch
      %72 = sbr.rel (0) target = $region41
    $region40: #{tpu_custom_call.1} parent=1 // pred_region
      _
    $region41: #{tpu_custom_call.1} parent=1 // pred_fallthru
      _
    // Predicated region
    $region42: #{tpu_custom_call.1} parent=1 // pred_check
      _
    $region43: #{tpu_custom_call.1} parent=1 // pred_check_branch
      %74 = sbr.rel (0) target = $region45
    $region44: #{tpu_custom_call.1} parent=1 // pred_region
      _
    $region45: #{tpu_custom_call.1} parent=1 // pred_fallthru
      _
    // Predicated region
    $region46: #{tpu_custom_call.1} parent=1 // pred_check
      _
    $region47: #{tpu_custom_call.1} parent=1 // pred_check_branch
      %76 = sbr.rel (0) target = $region49
    $region48: #{tpu_custom_call.1} parent=1 // pred_region
      _
    $region49: #{tpu_custom_call.1} parent=1 // pred_fallthru
      _
    // Predicated region
    $region50: #{tpu_custom_call.1} parent=1 // pred_check
      _
    $region51: #{tpu_custom_call.1} parent=1 // pred_check_branch
      %78 = sbr.rel (0) target = $region53
    $region52: #{tpu_custom_call.1} parent=1 // pred_region
      %80 = dma.done [#allocation4], 256
    $region53: #{tpu_custom_call.1} parent=1 // pred_fallthru
      _
    // Predicated region
    $region54: #{tpu_custom_call.1} parent=1 // pred_check
      _
    $region55: #{tpu_custom_call.1} parent=1 // pred_check_branch
      %82 = sbr.rel (0) target = $region57
    $region56: #{tpu_custom_call.1} parent=1 // pred_region
      %84 = dma.done [#allocation7], 512
    $region57: #{tpu_custom_call.1} parent=1 // pred_fallthru
      _
    // Predicated region
    $region58: #{tpu_custom_call.1} parent=1 // pred_check
      _
    $region59: #{tpu_custom_call.1} parent=1 // pred_check_branch
      %86 = sbr.rel (0) target = $region61
    $region60: #{tpu_custom_call.1} parent=1 // pred_region
      %88 = dma.done [#allocation7], 512
    $region61: #{tpu_custom_call.1} parent=1 // pred_fallthru
      _
    %v89 = vld [vmem:[%s0] sm:$0xff]
    %v90 = vld [vmem:[%s0 + $0x8] sm:$0xff]
    %v91 = vld [vmem:[%s0 + $0x10] sm:$0xff]
    %v92 = vld [vmem:[%s0 + $0x18] sm:$0xff]
    %v93 = vld [vmem:[%s0 + $0x20] sm:$0xff]
    %v94 = vld [vmem:[%s0 + $0x28] sm:$0xff]
    %v95 = vld [vmem:[%s0 + $0x30] sm:$0xff]
    %v96 = vld [vmem:[%s0 + $0x38] sm:$0xff]
    %v97 = vld [vmem:[#allocation3] sm:$0xff]
    %v98 = vld [vmem:[#allocation3 + $0x8] sm:$0xff]
    %v99 = vld [vmem:[%s3] sm:$0x1]
    %v101 = vperm.slane %v99, 0
    %vm103 = vcmask 130048
    %v105 = vsel %vm103, %v89, 0
    %v108 = vsel %vm103, %v90, 0
    %v111 = vsel %vm103, %v91, 0
    %v114 = vsel %vm103, %v92, 0
    %v117 = vsel %vm103, %v93, 0
    %v120 = vsel %vm103, %v94, 0
    %v123 = vsel %vm103, %v95, 0
    %v126 = vsel %vm103, %v96, 0
    %128 = vmatpush.msra.mxu0 0.0
    %129 = vmatpush.msra.mxu0 0.0
    %130 = vmatpush.msra.mxu0 0.0
    %131 = vmatpush.msra.mxu0 0.0
    %132 = vmatpush.msra.mxu0 0.0
    %133 = vmatpush.msra.mxu0 0.0
    %134 = vmatpush.msra.mxu0 0.0
    %135 = vmatpush.msra.mxu0 0.0
    %136 = vmatpush.msra.mxu0 0.0
    %137 = vmatpush.msra.mxu0 0.0
    %138 = vmatpush.msra.mxu0 0.0
    %139 = vmatpush.msra.mxu0 0.0
    %140 = vmatpush.msra.mxu0 0.0
    %141 = vmatpush.msra.mxu0 0.0
    %142 = vmatpush.msra.mxu0 %v98
    %143 = vmatpush.msra.mxu0 %v97
    %144 = vmatmul.f32.gmra.mxu0 %v105
    %v145 = vpop.f32.mrf.mxu0
    %v146 = vadd.f32 %v101, %v145
    %147 = vmatmul.f32.gmra.mxu0 %v108
    %v148 = vpop.f32.mrf.mxu0
    %v149 = vadd.f32 %v101, %v148
    %150 = vmatmul.f32.gmra.mxu0 %v111
    %v151 = vpop.f32.mrf.mxu0
    %v152 = vadd.f32 %v101, %v151
    %153 = vmatmul.f32.gmra.mxu0 %v114
    %v154 = vpop.f32.mrf.mxu0
    %v155 = vadd.f32 %v101, %v154
    %156 = vmatmul.f32.gmra.mxu0 %v117
    %v157 = vpop.f32.mrf.mxu0
    %v158 = vadd.f32 %v101, %v157
    %159 = vmatmul.f32.gmra.mxu0 %v120
    %v160 = vpop.f32.mrf.mxu0
    %v161 = vadd.f32 %v101, %v160
    %162 = vmatmul.f32.gmra.mxu0 %v123
    %v163 = vpop.f32.mrf.mxu0
    %v164 = vadd.f32 %v101, %v163
    %165 = vmatmul.f32.gmra.mxu0 %v126
    %v166 = vpop.f32.mrf.mxu0
    %v167 = vadd.f32 %v101, %v166
    %168 = vdwg.mxu0
    %169 = vst [vmem:[#allocation2] sm:$0xff] %v146
    %170 = vst [vmem:[#allocation2 + $0x8] sm:$0xff] %v149
    %171 = vst [vmem:[#allocation2 + $0x10] sm:$0xff] %v152
    %172 = vst [vmem:[#allocation2 + $0x18] sm:$0xff] %v155
    %173 = vst [vmem:[#allocation2 + $0x20] sm:$0xff] %v158
    %174 = vst [vmem:[#allocation2 + $0x28] sm:$0xff] %v161
    %175 = vst [vmem:[#allocation2 + $0x30] sm:$0xff] %v164
    %176 = vst [vmem:[#allocation2 + $0x38] sm:$0xff] %v167
    %v177 = vld [vmem:[%s6] sm:$0x1]
    %v179 = vperm.slane %v177, 0
    %v181 = vld [vmem:[%s9] sm:$0x1]
    %v183 = vperm.slane %v181, 0
    %v185 = vlaneseq
    %v186 = vand.u32 %v185, 127
    %vm187 = vcmp.ge.s32.totalorder %v186, 64
    %vm188 = vcmp.lt.s32.totalorder %v186, 96
    %vm189 = vmand %vm187, %vm188
    %v190 = vld [vmem:[#allocation2] sm:$0xff]
    %v191 = vld [vmem:[%s2] sm:$0xff]
    %v192 = vld [vmem:[%s2 + $0x8] sm:$0xff]
    %v193 = vld [vmem:[%s2 + $0x10] sm:$0xff]
    %v194 = vld [vmem:[%s2 + $0x18] sm:$0xff]
    %vm195 = vcmask 261120
    %v197 = vsel %vm195, 0.0, 0
    %199 = vmatpush.msra.mxu0 0.0
    %200 = vmatpush.msra.mxu0 0.0
    %201 = vmatpush.msra.mxu0 0.0
    %202 = vmatpush.msra.mxu0 0.0
    %203 = vmatpush.msra.mxu0 0.0
    %204 = vmatpush.msra.mxu0 0.0
    %205 = vmatpush.msra.mxu0 0.0
    %206 = vmatpush.msra.mxu0 0.0
    %207 = vmatpush.msra.mxu0 0.0
    %208 = vmatpush.msra.mxu0 0.0
    %209 = vmatpush.msra.mxu0 0.0
    %210 = vmatpush.msra.mxu0 0.0
    %211 = vmatpush.msra.mxu0 %v194
    %212 = vmatpush.msra.mxu0 %v193
    %213 = vmatpush.msra.mxu0 %v192
    %214 = vmatpush.msra.mxu0 %v191
    %215 = vmatmul.f32.gmra.mxu0 %v197
    %v216 = vpop.f32.mrf.mxu0
    %v217 = vadd.f32 0.0, %v216
    %218 = vdwg.mxu0
    %v219 = vadd.f32 %v190, %v217
    %v220 = vxor.u32 %v219, 2147483648
    %v221 = vmul.f32 %v220, 1.442695
    %v222 = vpow.pop %v221
    %v223 = vadd.f32 %v222, 1.0
    %v224 = vrcp.pop %v223
    %v225 = vmul.f32 %v223, %v224
    %v226 = vsub.f32 1.0, %v225
    %v227 = vmul.f32 %v224, %v226
    %v228 = vadd.f32 %v224, %v227
    %vm229 = vweird.f32 %v223
    %vm230 = vweird.f32 %v224
    %vm231 = vmor %vm229, %vm230
    %v232 = vsel %vm231, %v224, %v228
    %v233 = vand.u32 2147483647, %v223
    %vm234 = vcmp.eq.f32.partialorder %v233, 8.507059e+37
    %v235 = vand.u32 %v223, 2147483648
    %v236 = vor.u32 1.1754944e-38, %v235
    %v237 = vsel %vm234, %v236, %v232
    %v238 = vmul.f32 1.0, %v237
    %v239 = vtanh.pop %v219
    %v240 = vsel %vm189, %v239, %v238
    %v241 = vmul.f32 %v240, 0.0
    %243 = vrot.lane.b32.xlu0 %v240, 64
    %v244 = vpop.permute.xlu0 %243
    %v246 = vmul.f32 %v240, %v244
    %248 = vrot.lane.b32.xlu0 %v246, 32
    %v249 = vpop.permute.xlu0 %248
    %v251 = vadd.f32 %v241, %v249
    %v252 = vtanh.pop %v251
    %254 = vrot.lane.b32.xlu0 %v252, 64
    %v255 = vpop.permute.xlu0 %254
    %v257 = vmul.f32 %v240, %v255
    %v258 = vld [vmem:[#allocation2 + $0x8] sm:$0xff]
    %260 = vrot.lane.b32.xlu0 %v257, 32
    %v261 = vpop.permute.xlu0 %260
    %v262 = vsel %vm195, %v261, 0
    %264 = vmatpush.msra.mxu0 0.0
    %265 = vmatpush.msra.mxu0 0.0
    %266 = vmatpush.msra.mxu0 0.0
    %267 = vmatpush.msra.mxu0 0.0
    %268 = vmatpush.msra.mxu0 0.0
    %269 = vmatpush.msra.mxu0 0.0
    %270 = vmatpush.msra.mxu0 0.0
    %271 = vmatpush.msra.mxu0 0.0
    %272 = vmatpush.msra.mxu0 0.0
    %273 = vmatpush.msra.mxu0 0.0
    %274 = vmatpush.msra.mxu0 0.0
    %275 = vmatpush.msra.mxu0 0.0
    %276 = vmatpush.msra.mxu0 %v194
    %277 = vmatpush.msra.mxu0 %v193
    %278 = vmatpush.msra.mxu0 %v192
    %279 = vmatpush.msra.mxu0 %v191
    %280 = vmatmul.f32.gmra.mxu0 %v262
    %v281 = vpop.f32.mrf.mxu0
    %v282 = vadd.f32 0.0, %v281
    %283 = vdwg.mxu0
    %v284 = vadd.f32 %v258, %v282
    %v285 = vxor.u32 %v284, 2147483648
    %v286 = vmul.f32 %v285, 1.442695
    %v287 = vpow.pop %v286
    %v288 = vadd.f32 %v287, 1.0
    %v289 = vrcp.pop %v288
    %v290 = vmul.f32 %v288, %v289
    %v291 = vsub.f32 1.0, %v290
    %v292 = vmul.f32 %v289, %v291
    %v293 = vadd.f32 %v289, %v292
    %vm294 = vweird.f32 %v288
    %vm295 = vweird.f32 %v289
    %vm296 = vmor %vm294, %vm295
    %v297 = vsel %vm296, %v289, %v293
    %v298 = vand.u32 2147483647, %v288
    %vm299 = vcmp.eq.f32.partialorder %v298, 8.507059e+37
    %v300 = vand.u32 %v288, 2147483648
    %v301 = vor.u32 1.1754944e-38, %v300
    %v302 = vsel %vm299, %v301, %v297
    %v303 = vmul.f32 1.0, %v302
    %v304 = vtanh.pop %v284
    %v305 = vsel %vm189, %v304, %v303
    %v306 = vmul.f32 %v305, %v251
    %308 = vrot.lane.b32.xlu0 %v305, 64
    %v309 = vpop.permute.xlu0 %308
    %v311 = vmul.f32 %v305, %v309
    %313 = vrot.lane.b32.xlu0 %v311, 32
    %v314 = vpop.permute.xlu0 %313
    %v316 = vadd.f32 %v306, %v314
    %v317 = vtanh.pop %v316
    %319 = vrot.lane.b32.xlu0 %v317, 64
    %v320 = vpop.permute.xlu0 %319
    %v322 = vmul.f32 %v305, %v320
    %v323 = vld [vmem:[%s4] sm:$0xff]
    %v324 = vld [vmem:[%s4 + $0x8] sm:$0xff]
    %v325 = vld [vmem:[%s4 + $0x10] sm:$0xff]
    %v326 = vld [vmem:[%s4 + $0x18] sm:$0xff]
    %v327 = vld [vmem:[%s5] sm:$0xff]
    %v328 = vld [vmem:[%s5 + $0x8] sm:$0xff]
    %v329 = vld [vmem:[%s5 + $0x10] sm:$0xff]
    %v330 = vld [vmem:[%s5 + $0x18] sm:$0xff]
    %331 = vmatpush.msra.mxu0 0.0
    %332 = vmatpush.msra.mxu0 0.0
    %333 = vmatpush.msra.mxu0 0.0
    %334 = vmatpush.msra.mxu0 0.0
    %335 = vmatpush.msra.mxu0 0.0
    %336 = vmatpush.msra.mxu0 0.0
    %337 = vmatpush.msra.mxu0 0.0
    %338 = vmatpush.msra.mxu0 0.0
    %339 = vmatpush.msra.mxu0 0.0
    %340 = vmatpush.msra.mxu0 0.0
    %341 = vmatpush.msra.mxu0 0.0
    %342 = vmatpush.msra.mxu0 0.0
    %343 = vmatpush.msra.mxu0 %v330
    %344 = vmatpush.msra.mxu0 %v329
    %345 = vmatpush.msra.mxu0 %v328
    %346 = vmatpush.msra.mxu0 %v327
    %347 = vmatmul.f32.gmra.mxu0 %v197
    %v348 = vpop.f32.mrf.mxu0
    %v349 = vadd.f32 0.0, %v348
    %350 = vdwg.mxu0
    %351 = vmatpush.msra.mxu0 0.0
    %352 = vmatpush.msra.mxu0 0.0
    %353 = vmatpush.msra.mxu0 0.0
    %354 = vmatpush.msra.mxu0 0.0
    %355 = vmatpush.msra.mxu0 0.0
    %356 = vmatpush.msra.mxu0 0.0
    %357 = vmatpush.msra.mxu0 0.0
    %358 = vmatpush.msra.mxu0 0.0
    %359 = vmatpush.msra.mxu0 0.0
    %360 = vmatpush.msra.mxu0 0.0
    %361 = vmatpush.msra.mxu0 0.0
    %362 = vmatpush.msra.mxu0 0.0
    %363 = vmatpush.msra.mxu0 %v326
    %364 = vmatpush.msra.mxu0 %v325
    %365 = vmatpush.msra.mxu0 %v324
    %366 = vmatpush.msra.mxu0 %v323
    %367 = vmatmul.f32.gmra.mxu0 %v262
    %v368 = vpop.f32.mrf.mxu0
    %v369 = vadd.f32 %v349, %v368
    %370 = vdwg.mxu0
    %v371 = vadd.f32 %v369, %v179
    %v372 = vxor.u32 %v371, 2147483648
    %v373 = vmul.f32 %v372, 1.442695
    %v374 = vpow.pop %v373
    %v375 = vadd.f32 %v374, 1.0
    %v376 = vrcp.pop %v375
    %v377 = vmul.f32 %v375, %v376
    %v378 = vsub.f32 1.0, %v377
    %v379 = vmul.f32 %v376, %v378
    %v380 = vadd.f32 %v376, %v379
    %vm381 = vweird.f32 %v375
    %vm382 = vweird.f32 %v376
    %vm383 = vmor %vm381, %vm382
    %v384 = vsel %vm383, %v376, %v380
    %v385 = vand.u32 2147483647, %v375
    %vm386 = vcmp.eq.f32.partialorder %v385, 8.507059e+37
    %v387 = vand.u32 %v375, 2147483648
    %v388 = vor.u32 1.1754944e-38, %v387
    %v389 = vsel %vm386, %v388, %v384
    %v390 = vmul.f32 1.0, %v389
    %v391 = vtanh.pop %v371
    %v392 = vsel %vm189, %v391, %v390
    %v393 = vmul.f32 %v392, 0.0
    %395 = vrot.lane.b32.xlu0 %v392, 64
    %v396 = vpop.permute.xlu0 %395
    %v398 = vmul.f32 %v392, %v396
    %400 = vrot.lane.b32.xlu0 %v398, 32
    %v401 = vpop.permute.xlu0 %400
    %v403 = vadd.f32 %v393, %v401
    %v404 = vtanh.pop %v403
    %406 = vrot.lane.b32.xlu0 %v404, 64
    %v407 = vpop.permute.xlu0 %406
    %v409 = vmul.f32 %v392, %v407
    %v410 = vld [vmem:[#allocation2 + $0x10] sm:$0xff]
    %412 = vrot.lane.b32.xlu0 %v322, 32
    %v413 = vpop.permute.xlu0 %412
    %v414 = vsel %vm195, %v413, 0
    %416 = vmatpush.msra.mxu0 0.0
    %417 = vmatpush.msra.mxu0 0.0
    %418 = vmatpush.msra.mxu0 0.0
    %419 = vmatpush.msra.mxu0 0.0
    %420 = vmatpush.msra.mxu0 0.0
    %421 = vmatpush.msra.mxu0 0.0
    %422 = vmatpush.msra.mxu0 0.0
    %423 = vmatpush.msra.mxu0 0.0
    %424 = vmatpush.msra.mxu0 0.0
    %425 = vmatpush.msra.mxu0 0.0
    %426 = vmatpush.msra.mxu0 0.0
    %427 = vmatpush.msra.mxu0 0.0
    %428 = vmatpush.msra.mxu0 %v194
    %429 = vmatpush.msra.mxu0 %v193
    %430 = vmatpush.msra.mxu0 %v192
    %431 = vmatpush.msra.mxu0 %v191
    %432 = vmatmul.f32.gmra.mxu0 %v414
    %v433 = vpop.f32.mrf.mxu0
    %v434 = vadd.f32 0.0, %v433
    %435 = vdwg.mxu0
    %v436 = vadd.f32 %v410, %v434
    %v437 = vxor.u32 %v436, 2147483648
    %v438 = vmul.f32 %v437, 1.442695
    %v439 = vpow.pop %v438
    %v440 = vadd.f32 %v439, 1.0
    %v441 = vrcp.pop %v440
    %v442 = vmul.f32 %v440, %v441
    %v443 = vsub.f32 1.0, %v442
    %v444 = vmul.f32 %v441, %v443
    %v445 = vadd.f32 %v441, %v444
    %vm446 = vweird.f32 %v440
    %vm447 = vweird.f32 %v441
    %vm448 = vmor %vm446, %vm447
    %v449 = vsel %vm448, %v441, %v445
    %v450 = vand.u32 2147483647, %v440
    %vm451 = vcmp.eq.f32.partialorder %v450, 8.507059e+37
    %v452 = vand.u32 %v440, 2147483648
    %v453 = vor.u32 1.1754944e-38, %v452
    %v454 = vsel %vm451, %v453, %v449
    %v455 = vmul.f32 1.0, %v454
    %v456 = vtanh.pop %v436
    %v457 = vsel %vm189, %v456, %v455
    %v458 = vmul.f32 %v457, %v316
    %460 = vrot.lane.b32.xlu0 %v457, 64
    %v461 = vpop.permute.xlu0 %460
    %v463 = vmul.f32 %v457, %v461
    %465 = vrot.lane.b32.xlu0 %v463, 32
    %v466 = vpop.permute.xlu0 %465
    %v468 = vadd.f32 %v458, %v466
    %v469 = vtanh.pop %v468
    %471 = vrot.lane.b32.xlu0 %v469, 64
    %v472 = vpop.permute.xlu0 %471
    %v474 = vmul.f32 %v457, %v472
    %476 = vrot.lane.b32.xlu0 %v409, 32
    %v477 = vpop.permute.xlu0 %476
    %v478 = vsel %vm195, %v477, 0
    %480 = vmatpush.msra.mxu0 0.0
    %481 = vmatpush.msra.mxu0 0.0
    %482 = vmatpush.msra.mxu0 0.0
    %483 = vmatpush.msra.mxu0 0.0
    %484 = vmatpush.msra.mxu0 0.0
    %485 = vmatpush.msra.mxu0 0.0
    %486 = vmatpush.msra.mxu0 0.0
    %487 = vmatpush.msra.mxu0 0.0
    %488 = vmatpush.msra.mxu0 0.0
    %489 = vmatpush.msra.mxu0 0.0
    %490 = vmatpush.msra.mxu0 0.0
    %491 = vmatpush.msra.mxu0 0.0
    %492 = vmatpush.msra.mxu0 %v330
    %493 = vmatpush.msra.mxu0 %v329
    %494 = vmatpush.msra.mxu0 %v328
    %495 = vmatpush.msra.mxu0 %v327
    %496 = vmatmul.f32.gmra.mxu0 %v478
    %v497 = vpop.f32.mrf.mxu0
    %v498 = vadd.f32 0.0, %v497
    %499 = vdwg.mxu0
    %500 = vmatpush.msra.mxu0 0.0
    %501 = vmatpush.msra.mxu0 0.0
    %502 = vmatpush.msra.mxu0 0.0
    %503 = vmatpush.msra.mxu0 0.0
    %504 = vmatpush.msra.mxu0 0.0
    %505 = vmatpush.msra.mxu0 0.0
    %506 = vmatpush.msra.mxu0 0.0
    %507 = vmatpush.msra.mxu0 0.0
    %508 = vmatpush.msra.mxu0 0.0
    %509 = vmatpush.msra.mxu0 0.0
    %510 = vmatpush.msra.mxu0 0.0
    %511 = vmatpush.msra.mxu0 0.0
    %512 = vmatpush.msra.mxu0 %v326
    %513 = vmatpush.msra.mxu0 %v325
    %514 = vmatpush.msra.mxu0 %v324
    %515 = vmatpush.msra.mxu0 %v323
    %516 = vmatmul.f32.gmra.mxu0 %v414
    %v517 = vpop.f32.mrf.mxu0
    %v518 = vadd.f32 %v498, %v517
    %519 = vdwg.mxu0
    %v520 = vadd.f32 %v518, %v179
    %v521 = vxor.u32 %v520, 2147483648
    %v522 = vmul.f32 %v521, 1.442695
    %v523 = vpow.pop %v522
    %v524 = vadd.f32 %v523, 1.0
    %v525 = vrcp.pop %v524
    %v526 = vmul.f32 %v524, %v525
    %v527 = vsub.f32 1.0, %v526
    %v528 = vmul.f32 %v525, %v527
    %v529 = vadd.f32 %v525, %v528
    %vm530 = vweird.f32 %v524
    %vm531 = vweird.f32 %v525
    %vm532 = vmor %vm530, %vm531
    %v533 = vsel %vm532, %v525, %v529
    %v534 = vand.u32 2147483647, %v524
    %vm535 = vcmp.eq.f32.partialorder %v534, 8.507059e+37
    %v536 = vand.u32 %v524, 2147483648
    %v537 = vor.u32 1.1754944e-38, %v536
    %v538 = vsel %vm535, %v537, %v533
    %v539 = vmul.f32 1.0, %v538
    %v540 = vtanh.pop %v520
    %v541 = vsel %vm189, %v540, %v539
    %v542 = vmul.f32 %v541, %v403
    %544 = vrot.lane.b32.xlu0 %v541, 64
    %v545 = vpop.permute.xlu0 %544
    %v547 = vmul.f32 %v541, %v545
    %549 = vrot.lane.b32.xlu0 %v547, 32
    %v550 = vpop.permute.xlu0 %549
    %v552 = vadd.f32 %v542, %v550
    %v553 = vtanh.pop %v552
    %555 = vrot.lane.b32.xlu0 %v553, 64
    %v556 = vpop.permute.xlu0 %555
    %v558 = vmul.f32 %v541, %v556
    %v559 = vld [vmem:[#allocation6] sm:$0xff]
    %v560 = vld [vmem:[#allocation6 + $0x8] sm:$0xff]
    %v561 = vld [vmem:[#allocation6 + $0x10] sm:$0xff]
    %v562 = vld [vmem:[#allocation6 + $0x18] sm:$0xff]
    %v563 = vld [vmem:[#allocation8] sm:$0xff]
    %v564 = vld [vmem:[#allocation8 + $0x8] sm:$0xff]
    %v565 = vld [vmem:[#allocation8 + $0x10] sm:$0xff]
    %v566 = vld [vmem:[#allocation8 + $0x18] sm:$0xff]
    %567 = vmatpush.msra.mxu0 0.0
    %568 = vmatpush.msra.mxu0 0.0
    %569 = vmatpush.msra.mxu0 0.0
    %570 = vmatpush.msra.mxu0 0.0
    %571 = vmatpush.msra.mxu0 0.0
    %572 = vmatpush.msra.mxu0 0.0
    %573 = vmatpush.msra.mxu0 0.0
    %574 = vmatpush.msra.mxu0 0.0
    %575 = vmatpush.msra.mxu0 0.0
    %576 = vmatpush.msra.mxu0 0.0
    %577 = vmatpush.msra.mxu0 0.0
    %578 = vmatpush.msra.mxu0 0.0
    %579 = vmatpush.msra.mxu0 %v566
    %580 = vmatpush.msra.mxu0 %v565
    %581 = vmatpush.msra.mxu0 %v564
    %582 = vmatpush.msra.mxu0 %v563
    %583 = vmatmul.f32.gmra.mxu0 %v197
    %v584 = vpop.f32.mrf.mxu0
    %v585 = vadd.f32 0.0, %v584
    %586 = vdwg.mxu0
    %587 = vmatpush.msra.mxu0 0.0
    %588 = vmatpush.msra.mxu0 0.0
    %589 = vmatpush.msra.mxu0 0.0
    %590 = vmatpush.msra.mxu0 0.0
    %591 = vmatpush.msra.mxu0 0.0
    %592 = vmatpush.msra.mxu0 0.0
    %593 = vmatpush.msra.mxu0 0.0
    %594 = vmatpush.msra.mxu0 0.0
    %595 = vmatpush.msra.mxu0 0.0
    %596 = vmatpush.msra.mxu0 0.0
    %597 = vmatpush.msra.mxu0 0.0
    %598 = vmatpush.msra.mxu0 0.0
    %599 = vmatpush.msra.mxu0 %v562
    %600 = vmatpush.msra.mxu0 %v561
    %601 = vmatpush.msra.mxu0 %v560
    %602 = vmatpush.msra.mxu0 %v559
    %603 = vmatmul.f32.gmra.mxu0 %v478
    %v604 = vpop.f32.mrf.mxu0
    %v605 = vadd.f32 %v585, %v604
    %606 = vdwg.mxu0
    %v607 = vadd.f32 %v605, %v183
    %v608 = vxor.u32 %v607, 2147483648
    %v609 = vmul.f32 %v608, 1.442695
    %v610 = vpow.pop %v609
    %v611 = vadd.f32 %v610, 1.0
    %v612 = vrcp.pop %v611
    %v613 = vmul.f32 %v611, %v612
    %v614 = vsub.f32 1.0, %v613
    %v615 = vmul.f32 %v612, %v614
    %v616 = vadd.f32 %v612, %v615
    %vm617 = vweird.f32 %v611
    %vm618 = vweird.f32 %v612
    %vm619 = vmor %vm617, %vm618
    %v620 = vsel %vm619, %v612, %v616
    %v621 = vand.u32 2147483647, %v611
    %vm622 = vcmp.eq.f32.partialorder %v621, 8.507059e+37
    %v623 = vand.u32 %v611, 2147483648
    %v624 = vor.u32 1.1754944e-38, %v623
    %v625 = vsel %vm622, %v624, %v620
    %v626 = vmul.f32 1.0, %v625
    %v627 = vtanh.pop %v607
    %v628 = vsel %vm189, %v627, %v626
    %v629 = vmul.f32 %v628, 0.0
    %631 = vrot.lane.b32.xlu0 %v628, 64
    %v632 = vpop.permute.xlu0 %631
    %v634 = vmul.f32 %v628, %v632
    %636 = vrot.lane.b32.xlu0 %v634, 32
    %v637 = vpop.permute.xlu0 %636
    %v639 = vadd.f32 %v629, %v637
    %v640 = vtanh.pop %v639
    %642 = vrot.lane.b32.xlu0 %v640, 64
    %v643 = vpop.permute.xlu0 %642
    %v645 = vmul.f32 %v628, %v643
    %v646 = vld [vmem:[#allocation2 + $0x18] sm:$0xff]
    %648 = vrot.lane.b32.xlu0 %v474, 32
    %v649 = vpop.permute.xlu0 %648
    %v650 = vsel %vm195, %v649, 0
    %652 = vmatpush.msra.mxu0 0.0
    %653 = vmatpush.msra.mxu0 0.0
    %654 = vmatpush.msra.mxu0 0.0
    %655 = vmatpush.msra.mxu0 0.0
    %656 = vmatpush.msra.mxu0 0.0
    %657 = vmatpush.msra.mxu0 0.0
    %658 = vmatpush.msra.mxu0 0.0
    %659 = vmatpush.msra.mxu0 0.0
    %660 = vmatpush.msra.mxu0 0.0
    %661 = vmatpush.msra.mxu0 0.0
    %662 = vmatpush.msra.mxu0 0.0
    %663 = vmatpush.msra.mxu0 0.0
    %664 = vmatpush.msra.mxu0 %v194
    %665 = vmatpush.msra.mxu0 %v193
    %666 = vmatpush.msra.mxu0 %v192
    %667 = vmatpush.msra.mxu0 %v191
    %668 = vmatmul.f32.gmra.mxu0 %v650
    %v669 = vpop.f32.mrf.mxu0
    %v670 = vadd.f32 0.0, %v669
    %671 = vdwg.mxu0
    %v672 = vadd.f32 %v646, %v670
    %v673 = vxor.u32 %v672, 2147483648
    %v674 = vmul.f32 %v673, 1.442695
    %v675 = vpow.pop %v674
    %v676 = vadd.f32 %v675, 1.0
    %v677 = vrcp.pop %v676
    %v678 = vmul.f32 %v676, %v677
    %v679 = vsub.f32 1.0, %v678
    %v680 = vmul.f32 %v677, %v679
    %v681 = vadd.f32 %v677, %v680
    %vm682 = vweird.f32 %v676
    %vm683 = vweird.f32 %v677
    %vm684 = vmor %vm682, %vm683
    %v685 = vsel %vm684, %v677, %v681
    %v686 = vand.u32 2147483647, %v676
    %vm687 = vcmp.eq.f32.partialorder %v686, 8.507059e+37
    %v688 = vand.u32 %v676, 2147483648
    %v689 = vor.u32 1.1754944e-38, %v688
    %v690 = vsel %vm687, %v689, %v685
    %v691 = vmul.f32 1.0, %v690
    %v692 = vtanh.pop %v672
    %v693 = vsel %vm189, %v692, %v691
    %v694 = vmul.f32 %v693, %v468
    %696 = vrot.lane.b32.xlu0 %v693, 64
    %v697 = vpop.permute.xlu0 %696
    %v699 = vmul.f32 %v693, %v697
    %701 = vrot.lane.b32.xlu0 %v699, 32
    %v702 = vpop.permute.xlu0 %701
    %v704 = vadd.f32 %v694, %v702
    %v705 = vtanh.pop %v704
    %707 = vrot.lane.b32.xlu0 %v705, 64
    %v708 = vpop.permute.xlu0 %707
    %v710 = vmul.f32 %v693, %v708
    %712 = vrot.lane.b32.xlu0 %v558, 32
    %v713 = vpop.permute.xlu0 %712
    %v714 = vsel %vm195, %v713, 0
    %716 = vmatpush.msra.mxu0 0.0
    %717 = vmatpush.msra.mxu0 0.0
    %718 = vmatpush.msra.mxu0 0.0
    %719 = vmatpush.msra.mxu0 0.0
    %720 = vmatpush.msra.mxu0 0.0
    %721 = vmatpush.msra.mxu0 0.0
    %722 = vmatpush.msra.mxu0 0.0
    %723 = vmatpush.msra.mxu0 0.0
    %724 = vmatpush.msra.mxu0 0.0
    %725 = vmatpush.msra.mxu0 0.0
    %726 = vmatpush.msra.mxu0 0.0
    %727 = vmatpush.msra.mxu0 0.0
    %728 = vmatpush.msra.mxu0 %v330
    %729 = vmatpush.msra.mxu0 %v329
    %730 = vmatpush.msra.mxu0 %v328
    %731 = vmatpush.msra.mxu0 %v327
    %732 = vmatmul.f32.gmra.mxu0 %v714
    %v733 = vpop.f32.mrf.mxu0
    %v734 = vadd.f32 0.0, %v733
    %735 = vdwg.mxu0
    %736 = vmatpush.msra.mxu0 0.0
    %737 = vmatpush.msra.mxu0 0.0
    %738 = vmatpush.msra.mxu0 0.0
    %739 = vmatpush.msra.mxu0 0.0
    %740 = vmatpush.msra.mxu0 0.0
    %741 = vmatpush.msra.mxu0 0.0
    %742 = vmatpush.msra.mxu0 0.0
    %743 = vmatpush.msra.mxu0 0.0
    %744 = vmatpush.msra.mxu0 0.0
    %745 = vmatpush.msra.mxu0 0.0
    %746 = vmatpush.msra.mxu0 0.0
    %747 = vmatpush.msra.mxu0 0.0
    %748 = vmatpush.msra.mxu0 %v326
    %749 = vmatpush.msra.mxu0 %v325
    %750 = vmatpush.msra.mxu0 %v324
    %751 = vmatpush.msra.mxu0 %v323
    %752 = vmatmul.f32.gmra.mxu0 %v650
    %v753 = vpop.f32.mrf.mxu0
    %v754 = vadd.f32 %v734, %v753
    %755 = vdwg.mxu0
    %v756 = vadd.f32 %v754, %v179
    %v757 = vxor.u32 %v756, 2147483648
    %v758 = vmul.f32 %v757, 1.442695
    %v759 = vpow.pop %v758
    %v760 = vadd.f32 %v759, 1.0
    %v761 = vrcp.pop %v760
    %v762 = vmul.f32 %v760, %v761
    %v763 = vsub.f32 1.0, %v762
    %v764 = vmul.f32 %v761, %v763
    %v765 = vadd.f32 %v761, %v764
    %vm766 = vweird.f32 %v760
    %vm767 = vweird.f32 %v761
    %vm768 = vmor %vm766, %vm767
    %v769 = vsel %vm768, %v761, %v765
    %v770 = vand.u32 2147483647, %v760
    %vm771 = vcmp.eq.f32.partialorder %v770, 8.507059e+37
    %v772 = vand.u32 %v760, 2147483648
    %v773 = vor.u32 1.1754944e-38, %v772
    %v774 = vsel %vm771, %v773, %v769
    %v775 = vmul.f32 1.0, %v774
    %v776 = vtanh.pop %v756
    %v777 = vsel %vm189, %v776, %v775
    %v778 = vmul.f32 %v777, %v552
    %780 = vrot.lane.b32.xlu0 %v777, 64
    %v781 = vpop.permute.xlu0 %780
    %v783 = vmul.f32 %v777, %v781
    %785 = vrot.lane.b32.xlu0 %v783, 32
    %v786 = vpop.permute.xlu0 %785
    %v788 = vadd.f32 %v778, %v786
    %v789 = vtanh.pop %v788
    %791 = vrot.lane.b32.xlu0 %v789, 64
    %v792 = vpop.permute.xlu0 %791
    %v794 = vmul.f32 %v777, %v792
    %796 = vrot.lane.b32.xlu0 %v645, 32
    %v797 = vpop.permute.xlu0 %796
    %v798 = vsel %vm195, %v797, 0
    %800 = vmatpush.msra.mxu0 0.0
    %801 = vmatpush.msra.mxu0 0.0
    %802 = vmatpush.msra.mxu0 0.0
    %803 = vmatpush.msra.mxu0 0.0
    %804 = vmatpush.msra.mxu0 0.0
    %805 = vmatpush.msra.mxu0 0.0
    %806 = vmatpush.msra.mxu0 0.0
    %807 = vmatpush.msra.mxu0 0.0
    %808 = vmatpush.msra.mxu0 0.0
    %809 = vmatpush.msra.mxu0 0.0
    %810 = vmatpush.msra.mxu0 0.0
    %811 = vmatpush.msra.mxu0 0.0
    %812 = vmatpush.msra.mxu0 %v566
    %813 = vmatpush.msra.mxu0 %v565
    %814 = vmatpush.msra.mxu0 %v564
    %815 = vmatpush.msra.mxu0 %v563
    %816 = vmatmul.f32.gmra.mxu0 %v798
    %v817 = vpop.f32.mrf.mxu0
    %v818 = vadd.f32 0.0, %v817
    %819 = vdwg.mxu0
    %820 = vmatpush.msra.mxu0 0.0
    %821 = vmatpush.msra.mxu0 0.0
    %822 = vmatpush.msra.mxu0 0.0
    %823 = vmatpush.msra.mxu0 0.0
    %824 = vmatpush.msra.mxu0 0.0
    %825 = vmatpush.msra.mxu0 0.0
    %826 = vmatpush.msra.mxu0 0.0
    %827 = vmatpush.msra.mxu0 0.0
    %828 = vmatpush.msra.mxu0 0.0
    %829 = vmatpush.msra.mxu0 0.0
    %830 = vmatpush.msra.mxu0 0.0
    %831 = vmatpush.msra.mxu0 0.0
    %832 = vmatpush.msra.mxu0 %v562
    %833 = vmatpush.msra.mxu0 %v561
    %834 = vmatpush.msra.mxu0 %v560
    %835 = vmatpush.msra.mxu0 %v559
    %836 = vmatmul.f32.gmra.mxu0 %v714
    %v837 = vpop.f32.mrf.mxu0
    %v838 = vadd.f32 %v818, %v837
    %839 = vdwg.mxu0
    %v840 = vadd.f32 %v838, %v183
    %v841 = vxor.u32 %v840, 2147483648
    %v842 = vmul.f32 %v841, 1.442695
    %v843 = vpow.pop %v842
    %v844 = vadd.f32 %v843, 1.0
    %v845 = vrcp.pop %v844
    %v846 = vmul.f32 %v844, %v845
    %v847 = vsub.f32 1.0, %v846
    %v848 = vmul.f32 %v845, %v847
    %v849 = vadd.f32 %v845, %v848
    %vm850 = vweird.f32 %v844
    %vm851 = vweird.f32 %v845
    %vm852 = vmor %vm850, %vm851
    %v853 = vsel %vm852, %v845, %v849
    %v854 = vand.u32 2147483647, %v844
    %vm855 = vcmp.eq.f32.partialorder %v854, 8.507059e+37
    %v856 = vand.u32 %v844, 2147483648
    %v857 = vor.u32 1.1754944e-38, %v856
    %v858 = vsel %vm855, %v857, %v853
    %v859 = vmul.f32 1.0, %v858
    %v860 = vtanh.pop %v840
    %v861 = vsel %vm189, %v860, %v859
    %v862 = vmul.f32 %v861, %v639
    %864 = vrot.lane.b32.xlu0 %v861, 64
    %v865 = vpop.permute.xlu0 %864
    %v867 = vmul.f32 %v861, %v865
    %869 = vrot.lane.b32.xlu0 %v867, 32
    %v870 = vpop.permute.xlu0 %869
    %v872 = vadd.f32 %v862, %v870
    %v873 = vtanh.pop %v872
    %875 = vrot.lane.b32.xlu0 %v873, 64
    %v876 = vpop.permute.xlu0 %875
    %v878 = vmul.f32 %v861, %v876
    %v879 = vld [vmem:[#allocation2 + $0x20] sm:$0xff]
    %881 = vrot.lane.b32.xlu0 %v710, 32
    %v882 = vpop.permute.xlu0 %881
    %v883 = vsel %vm195, %v882, 0
    %885 = vmatpush.msra.mxu0 0.0
    %886 = vmatpush.msra.mxu0 0.0
    %887 = vmatpush.msra.mxu0 0.0
    %888 = vmatpush.msra.mxu0 0.0
    %889 = vmatpush.msra.mxu0 0.0
    %890 = vmatpush.msra.mxu0 0.0
    %891 = vmatpush.msra.mxu0 0.0
    %892 = vmatpush.msra.mxu0 0.0
    %893 = vmatpush.msra.mxu0 0.0
    %894 = vmatpush.msra.mxu0 0.0
    %895 = vmatpush.msra.mxu0 0.0
    %896 = vmatpush.msra.mxu0 0.0
    %897 = vmatpush.msra.mxu0 %v194
    %898 = vmatpush.msra.mxu0 %v193
    %899 = vmatpush.msra.mxu0 %v192
    %900 = vmatpush.msra.mxu0 %v191
    %901 = vmatmul.f32.gmra.mxu0 %v883
    %v902 = vpop.f32.mrf.mxu0
    %v903 = vadd.f32 0.0, %v902
    %904 = vdwg.mxu0
    %v905 = vadd.f32 %v879, %v903
    %v906 = vxor.u32 %v905, 2147483648
    %v907 = vmul.f32 %v906, 1.442695
    %v908 = vpow.pop %v907
    %v909 = vadd.f32 %v908, 1.0
    %v910 = vrcp.pop %v909
    %v911 = vmul.f32 %v909, %v910
    %v912 = vsub.f32 1.0, %v911
    %v913 = vmul.f32 %v910, %v912
    %v914 = vadd.f32 %v910, %v913
    %vm915 = vweird.f32 %v909
    %vm916 = vweird.f32 %v910
    %vm917 = vmor %vm915, %vm916
    %v918 = vsel %vm917, %v910, %v914
    %v919 = vand.u32 2147483647, %v909
    %vm920 = vcmp.eq.f32.partialorder %v919, 8.507059e+37
    %v921 = vand.u32 %v909, 2147483648
    %v922 = vor.u32 1.1754944e-38, %v921
    %v923 = vsel %vm920, %v922, %v918
    %v924 = vmul.f32 1.0, %v923
    %v925 = vtanh.pop %v905
    %v926 = vsel %vm189, %v925, %v924
    %v927 = vmul.f32 %v926, %v704
    %929 = vrot.lane.b32.xlu0 %v926, 64
    %v930 = vpop.permute.xlu0 %929
    %v932 = vmul.f32 %v926, %v930
    %934 = vrot.lane.b32.xlu0 %v932, 32
    %v935 = vpop.permute.xlu0 %934
    %v937 = vadd.f32 %v927, %v935
    %v938 = vtanh.pop %v937
    %940 = vrot.lane.b32.xlu0 %v938, 64
    %v941 = vpop.permute.xlu0 %940
    %v943 = vmul.f32 %v926, %v941
    %945 = vrot.lane.b32.xlu0 %v794, 32
    %v946 = vpop.permute.xlu0 %945
    %v947 = vsel %vm195, %v946, 0
    %949 = vmatpush.msra.mxu0 0.0
    %950 = vmatpush.msra.mxu0 0.0
    %951 = vmatpush.msra.mxu0 0.0
    %952 = vmatpush.msra.mxu0 0.0
    %953 = vmatpush.msra.mxu0 0.0
    %954 = vmatpush.msra.mxu0 0.0
    %955 = vmatpush.msra.mxu0 0.0
    %956 = vmatpush.msra.mxu0 0.0
    %957 = vmatpush.msra.mxu0 0.0
    %958 = vmatpush.msra.mxu0 0.0
    %959 = vmatpush.msra.mxu0 0.0
    %960 = vmatpush.msra.mxu0 0.0
    %961 = vmatpush.msra.mxu0 %v330
    %962 = vmatpush.msra.mxu0 %v329
    %963 = vmatpush.msra.mxu0 %v328
    %964 = vmatpush.msra.mxu0 %v327
    %965 = vmatmul.f32.gmra.mxu0 %v947
    %v966 = vpop.f32.mrf.mxu0
    %v967 = vadd.f32 0.0, %v966
    %968 = vdwg.mxu0
    %969 = vmatpush.msra.mxu0 0.0
    %970 = vmatpush.msra.mxu0 0.0
    %971 = vmatpush.msra.mxu0 0.0
    %972 = vmatpush.msra.mxu0 0.0
    %973 = vmatpush.msra.mxu0 0.0
    %974 = vmatpush.msra.mxu0 0.0
    %975 = vmatpush.msra.mxu0 0.0
    %976 = vmatpush.msra.mxu0 0.0
    %977 = vmatpush.msra.mxu0 0.0
    %978 = vmatpush.msra.mxu0 0.0
    %979 = vmatpush.msra.mxu0 0.0
    %980 = vmatpush.msra.mxu0 0.0
    %981 = vmatpush.msra.mxu0 %v326
    %982 = vmatpush.msra.mxu0 %v325
    %983 = vmatpush.msra.mxu0 %v324
    %984 = vmatpush.msra.mxu0 %v323
    %985 = vmatmul.f32.gmra.mxu0 %v883
    %v986 = vpop.f32.mrf.mxu0
    %v987 = vadd.f32 %v967, %v986
    %988 = vdwg.mxu0
    %v989 = vadd.f32 %v987, %v179
    %v990 = vxor.u32 %v989, 2147483648
    %v991 = vmul.f32 %v990, 1.442695
    %v992 = vpow.pop %v991
    %v993 = vadd.f32 %v992, 1.0
    %v994 = vrcp.pop %v993
    %v995 = vmul.f32 %v993, %v994
    %v996 = vsub.f32 1.0, %v995
    %v997 = vmul.f32 %v994, %v996
    %v998 = vadd.f32 %v994, %v997
    %vm999 = vweird.f32 %v993
    %vm1000 = vweird.f32 %v994
    %vm1001 = vmor %vm999, %vm1000
    %v1002 = vsel %vm1001, %v994, %v998
    %v1003 = vand.u32 2147483647, %v993
    %vm1004 = vcmp.eq.f32.partialorder %v1003, 8.507059e+37
    %v1005 = vand.u32 %v993, 2147483648
    %v1006 = vor.u32 1.1754944e-38, %v1005
    %v1007 = vsel %vm1004, %v1006, %v1002
    %v1008 = vmul.f32 1.0, %v1007
    %v1009 = vtanh.pop %v989
    %v1010 = vsel %vm189, %v1009, %v1008
    %v1011 = vmul.f32 %v1010, %v788
    %1013 = vrot.lane.b32.xlu0 %v1010, 64
    %v1014 = vpop.permute.xlu0 %1013
    %v1016 = vmul.f32 %v1010, %v1014
    %1018 = vrot.lane.b32.xlu0 %v1016, 32
    %v1019 = vpop.permute.xlu0 %1018
    %v1021 = vadd.f32 %v1011, %v1019
    %v1022 = vtanh.pop %v1021
    %1024 = vrot.lane.b32.xlu0 %v1022, 64
    %v1025 = vpop.permute.xlu0 %1024
    %v1027 = vmul.f32 %v1010, %v1025
    %1029 = vrot.lane.b32.xlu0 %v878, 32
    %v1030 = vpop.permute.xlu0 %1029
    %v1031 = vsel %vm195, %v1030, 0
    %1033 = vmatpush.msra.mxu0 0.0
    %1034 = vmatpush.msra.mxu0 0.0
    %1035 = vmatpush.msra.mxu0 0.0
    %1036 = vmatpush.msra.mxu0 0.0
    %1037 = vmatpush.msra.mxu0 0.0
    %1038 = vmatpush.msra.mxu0 0.0
    %1039 = vmatpush.msra.mxu0 0.0
    %1040 = vmatpush.msra.mxu0 0.0
    %1041 = vmatpush.msra.mxu0 0.0
    %1042 = vmatpush.msra.mxu0 0.0
    %1043 = vmatpush.msra.mxu0 0.0
    %1044 = vmatpush.msra.mxu0 0.0
    %1045 = vmatpush.msra.mxu0 %v566
    %1046 = vmatpush.msra.mxu0 %v565
    %1047 = vmatpush.msra.mxu0 %v564
    %1048 = vmatpush.msra.mxu0 %v563
    %1049 = vmatmul.f32.gmra.mxu0 %v1031
    %v1050 = vpop.f32.mrf.mxu0
    %v1051 = vadd.f32 0.0, %v1050
    %1052 = vdwg.mxu0
    %1053 = vmatpush.msra.mxu0 0.0
    %1054 = vmatpush.msra.mxu0 0.0
    %1055 = vmatpush.msra.mxu0 0.0
    %1056 = vmatpush.msra.mxu0 0.0
    %1057 = vmatpush.msra.mxu0 0.0
    %1058 = vmatpush.msra.mxu0 0.0
    %1059 = vmatpush.msra.mxu0 0.0
    %1060 = vmatpush.msra.mxu0 0.0
    %1061 = vmatpush.msra.mxu0 0.0
    %1062 = vmatpush.msra.mxu0 0.0
    %1063 = vmatpush.msra.mxu0 0.0
    %1064 = vmatpush.msra.mxu0 0.0
    %1065 = vmatpush.msra.mxu0 %v562
    %1066 = vmatpush.msra.mxu0 %v561
    %1067 = vmatpush.msra.mxu0 %v560
    %1068 = vmatpush.msra.mxu0 %v559
    %1069 = vmatmul.f32.gmra.mxu0 %v947
    %v1070 = vpop.f32.mrf.mxu0
    %v1071 = vadd.f32 %v1051, %v1070
    %1072 = vdwg.mxu0
    %v1073 = vadd.f32 %v1071, %v183
    %v1074 = vxor.u32 %v1073, 2147483648
    %v1075 = vmul.f32 %v1074, 1.442695
    %v1076 = vpow.pop %v1075
    %v1077 = vadd.f32 %v1076, 1.0
    %v1078 = vrcp.pop %v1077
    %v1079 = vmul.f32 %v1077, %v1078
    %v1080 = vsub.f32 1.0, %v1079
    %v1081 = vmul.f32 %v1078, %v1080
    %v1082 = vadd.f32 %v1078, %v1081
    %vm1083 = vweird.f32 %v1077
    %vm1084 = vweird.f32 %v1078
    %vm1085 = vmor %vm1083, %vm1084
    %v1086 = vsel %vm1085, %v1078, %v1082
    %v1087 = vand.u32 2147483647, %v1077
    %vm1088 = vcmp.eq.f32.partialorder %v1087, 8.507059e+37
    %v1089 = vand.u32 %v1077, 2147483648
    %v1090 = vor.u32 1.1754944e-38, %v1089
    %v1091 = vsel %vm1088, %v1090, %v1086
    %v1092 = vmul.f32 1.0, %v1091
    %v1093 = vtanh.pop %v1073
    %v1094 = vsel %vm189, %v1093, %v1092
    %v1095 = vmul.f32 %v1094, %v872
    %1097 = vrot.lane.b32.xlu0 %v1094, 64
    %v1098 = vpop.permute.xlu0 %1097
    %v1100 = vmul.f32 %v1094, %v1098
    %1102 = vrot.lane.b32.xlu0 %v1100, 32
    %v1103 = vpop.permute.xlu0 %1102
    %v1105 = vadd.f32 %v1095, %v1103
    %v1106 = vtanh.pop %v1105
    %1108 = vrot.lane.b32.xlu0 %v1106, 64
    %v1109 = vpop.permute.xlu0 %1108
    %v1111 = vmul.f32 %v1094, %v1109
    %v1112 = vld [vmem:[#allocation2 + $0x28] sm:$0xff]
    %1114 = vrot.lane.b32.xlu0 %v943, 32
    %v1115 = vpop.permute.xlu0 %1114
    %v1116 = vsel %vm195, %v1115, 0
    %1118 = vmatpush.msra.mxu0 0.0
    %1119 = vmatpush.msra.mxu0 0.0
    %1120 = vmatpush.msra.mxu0 0.0
    %1121 = vmatpush.msra.mxu0 0.0
    %1122 = vmatpush.msra.mxu0 0.0
    %1123 = vmatpush.msra.mxu0 0.0
    %1124 = vmatpush.msra.mxu0 0.0
    %1125 = vmatpush.msra.mxu0 0.0
    %1126 = vmatpush.msra.mxu0 0.0
    %1127 = vmatpush.msra.mxu0 0.0
    %1128 = vmatpush.msra.mxu0 0.0
    %1129 = vmatpush.msra.mxu0 0.0
    %1130 = vmatpush.msra.mxu0 %v194
    %1131 = vmatpush.msra.mxu0 %v193
    %1132 = vmatpush.msra.mxu0 %v192
    %1133 = vmatpush.msra.mxu0 %v191
    %1134 = vmatmul.f32.gmra.mxu0 %v1116
    %v1135 = vpop.f32.mrf.mxu0
    %v1136 = vadd.f32 0.0, %v1135
    %1137 = vdwg.mxu0
    %v1138 = vadd.f32 %v1112, %v1136
    %v1139 = vxor.u32 %v1138, 2147483648
    %v1140 = vmul.f32 %v1139, 1.442695
    %v1141 = vpow.pop %v1140
    %v1142 = vadd.f32 %v1141, 1.0
    %v1143 = vrcp.pop %v1142
    %v1144 = vmul.f32 %v1142, %v1143
    %v1145 = vsub.f32 1.0, %v1144
    %v1146 = vmul.f32 %v1143, %v1145
    %v1147 = vadd.f32 %v1143, %v1146
    %vm1148 = vweird.f32 %v1142
    %vm1149 = vweird.f32 %v1143
    %vm1150 = vmor %vm1148, %vm1149
    %v1151 = vsel %vm1150, %v1143, %v1147
    %v1152 = vand.u32 2147483647, %v1142
    %vm1153 = vcmp.eq.f32.partialorder %v1152, 8.507059e+37
    %v1154 = vand.u32 %v1142, 2147483648
    %v1155 = vor.u32 1.1754944e-38, %v1154
    %v1156 = vsel %vm1153, %v1155, %v1151
    %v1157 = vmul.f32 1.0, %v1156
    %v1158 = vtanh.pop %v1138
    %v1159 = vsel %vm189, %v1158, %v1157
    %v1160 = vmul.f32 %v1159, %v937
    %1162 = vrot.lane.b32.xlu0 %v1159, 64
    %v1163 = vpop.permute.xlu0 %1162
    %v1165 = vmul.f32 %v1159, %v1163
    %1167 = vrot.lane.b32.xlu0 %v1165, 32
    %v1168 = vpop.permute.xlu0 %1167
    %v1170 = vadd.f32 %v1160, %v1168
    %v1171 = vtanh.pop %v1170
    %1173 = vrot.lane.b32.xlu0 %v1171, 64
    %v1174 = vpop.permute.xlu0 %1173
    %v1176 = vmul.f32 %v1159, %v1174
    %1178 = vrot.lane.b32.xlu0 %v1027, 32
    %v1179 = vpop.permute.xlu0 %1178
    %v1180 = vsel %vm195, %v1179, 0
    %1182 = vmatpush.msra.mxu0 0.0
    %1183 = vmatpush.msra.mxu0 0.0
    %1184 = vmatpush.msra.mxu0 0.0
    %1185 = vmatpush.msra.mxu0 0.0
    %1186 = vmatpush.msra.mxu0 0.0
    %1187 = vmatpush.msra.mxu0 0.0
    %1188 = vmatpush.msra.mxu0 0.0
    %1189 = vmatpush.msra.mxu0 0.0
    %1190 = vmatpush.msra.mxu0 0.0
    %1191 = vmatpush.msra.mxu0 0.0
    %1192 = vmatpush.msra.mxu0 0.0
    %1193 = vmatpush.msra.mxu0 0.0
    %1194 = vmatpush.msra.mxu0 %v330
    %1195 = vmatpush.msra.mxu0 %v329
    %1196 = vmatpush.msra.mxu0 %v328
    %1197 = vmatpush.msra.mxu0 %v327
    %1198 = vmatmul.f32.gmra.mxu0 %v1180
    %v1199 = vpop.f32.mrf.mxu0
    %v1200 = vadd.f32 0.0, %v1199
    %1201 = vdwg.mxu0
    %1202 = vmatpush.msra.mxu0 0.0
    %1203 = vmatpush.msra.mxu0 0.0
    %1204 = vmatpush.msra.mxu0 0.0
    %1205 = vmatpush.msra.mxu0 0.0
    %1206 = vmatpush.msra.mxu0 0.0
    %1207 = vmatpush.msra.mxu0 0.0
    %1208 = vmatpush.msra.mxu0 0.0
    %1209 = vmatpush.msra.mxu0 0.0
    %1210 = vmatpush.msra.mxu0 0.0
    %1211 = vmatpush.msra.mxu0 0.0
    %1212 = vmatpush.msra.mxu0 0.0
    %1213 = vmatpush.msra.mxu0 0.0
    %1214 = vmatpush.msra.mxu0 %v326
    %1215 = vmatpush.msra.mxu0 %v325
    %1216 = vmatpush.msra.mxu0 %v324
    %1217 = vmatpush.msra.mxu0 %v323
    %1218 = vmatmul.f32.gmra.mxu0 %v1116
    %v1219 = vpop.f32.mrf.mxu0
    %v1220 = vadd.f32 %v1200, %v1219
    %1221 = vdwg.mxu0
    %v1222 = vadd.f32 %v1220, %v179
    %v1223 = vxor.u32 %v1222, 2147483648
    %v1224 = vmul.f32 %v1223, 1.442695
    %v1225 = vpow.pop %v1224
    %v1226 = vadd.f32 %v1225, 1.0
    %v1227 = vrcp.pop %v1226
    %v1228 = vmul.f32 %v1226, %v1227
    %v1229 = vsub.f32 1.0, %v1228
    %v1230 = vmul.f32 %v1227, %v1229
    %v1231 = vadd.f32 %v1227, %v1230
    %vm1232 = vweird.f32 %v1226
    %vm1233 = vweird.f32 %v1227
    %vm1234 = vmor %vm1232, %vm1233
    %v1235 = vsel %vm1234, %v1227, %v1231
    %v1236 = vand.u32 2147483647, %v1226
    %vm1237 = vcmp.eq.f32.partialorder %v1236, 8.507059e+37
    %v1238 = vand.u32 %v1226, 2147483648
    %v1239 = vor.u32 1.1754944e-38, %v1238
    %v1240 = vsel %vm1237, %v1239, %v1235
    %v1241 = vmul.f32 1.0, %v1240
    %v1242 = vtanh.pop %v1222
    %v1243 = vsel %vm189, %v1242, %v1241
    %v1244 = vmul.f32 %v1243, %v1021
    %1246 = vrot.lane.b32.xlu0 %v1243, 64
    %v1247 = vpop.permute.xlu0 %1246
    %v1249 = vmul.f32 %v1243, %v1247
    %1251 = vrot.lane.b32.xlu0 %v1249, 32
    %v1252 = vpop.permute.xlu0 %1251
    %v1254 = vadd.f32 %v1244, %v1252
    %v1255 = vtanh.pop %v1254
    %1257 = vrot.lane.b32.xlu0 %v1255, 64
    %v1258 = vpop.permute.xlu0 %1257
    %v1260 = vmul.f32 %v1243, %v1258
    %1262 = vrot.lane.b32.xlu0 %v1111, 32
    %v1263 = vpop.permute.xlu0 %1262
    %v1264 = vsel %vm195, %v1263, 0
    %1266 = vmatpush.msra.mxu0 0.0
    %1267 = vmatpush.msra.mxu0 0.0
    %1268 = vmatpush.msra.mxu0 0.0
    %1269 = vmatpush.msra.mxu0 0.0
    %1270 = vmatpush.msra.mxu0 0.0
    %1271 = vmatpush.msra.mxu0 0.0
    %1272 = vmatpush.msra.mxu0 0.0
    %1273 = vmatpush.msra.mxu0 0.0
    %1274 = vmatpush.msra.mxu0 0.0
    %1275 = vmatpush.msra.mxu0 0.0
    %1276 = vmatpush.msra.mxu0 0.0
    %1277 = vmatpush.msra.mxu0 0.0
    %1278 = vmatpush.msra.mxu0 %v566
    %1279 = vmatpush.msra.mxu0 %v565
    %1280 = vmatpush.msra.mxu0 %v564
    %1281 = vmatpush.msra.mxu0 %v563
    %1282 = vmatmul.f32.gmra.mxu0 %v1264
    %v1283 = vpop.f32.mrf.mxu0
    %v1284 = vadd.f32 0.0, %v1283
    %1285 = vdwg.mxu0
    %1286 = vmatpush.msra.mxu0 0.0
    %1287 = vmatpush.msra.mxu0 0.0
    %1288 = vmatpush.msra.mxu0 0.0
    %1289 = vmatpush.msra.mxu0 0.0
    %1290 = vmatpush.msra.mxu0 0.0
    %1291 = vmatpush.msra.mxu0 0.0
    %1292 = vmatpush.msra.mxu0 0.0
    %1293 = vmatpush.msra.mxu0 0.0
    %1294 = vmatpush.msra.mxu0 0.0
    %1295 = vmatpush.msra.mxu0 0.0
    %1296 = vmatpush.msra.mxu0 0.0
    %1297 = vmatpush.msra.mxu0 0.0
    %1298 = vmatpush.msra.mxu0 %v562
    %1299 = vmatpush.msra.mxu0 %v561
    %1300 = vmatpush.msra.mxu0 %v560
    %1301 = vmatpush.msra.mxu0 %v559
    %1302 = vmatmul.f32.gmra.mxu0 %v1180
    %v1303 = vpop.f32.mrf.mxu0
    %v1304 = vadd.f32 %v1284, %v1303
    %1305 = vdwg.mxu0
    %v1306 = vadd.f32 %v1304, %v183
    %v1307 = vxor.u32 %v1306, 2147483648
    %v1308 = vmul.f32 %v1307, 1.442695
    %v1309 = vpow.pop %v1308
    %v1310 = vadd.f32 %v1309, 1.0
    %v1311 = vrcp.pop %v1310
    %v1312 = vmul.f32 %v1310, %v1311
    %v1313 = vsub.f32 1.0, %v1312
    %v1314 = vmul.f32 %v1311, %v1313
    %v1315 = vadd.f32 %v1311, %v1314
    %vm1316 = vweird.f32 %v1310
    %vm1317 = vweird.f32 %v1311
    %vm1318 = vmor %vm1316, %vm1317
    %v1319 = vsel %vm1318, %v1311, %v1315
    %v1320 = vand.u32 2147483647, %v1310
    %vm1321 = vcmp.eq.f32.partialorder %v1320, 8.507059e+37
    %v1322 = vand.u32 %v1310, 2147483648
    %v1323 = vor.u32 1.1754944e-38, %v1322
    %v1324 = vsel %vm1321, %v1323, %v1319
    %v1325 = vmul.f32 1.0, %v1324
    %v1326 = vtanh.pop %v1306
    %v1327 = vsel %vm189, %v1326, %v1325
    %v1328 = vmul.f32 %v1327, %v1105
    %1330 = vrot.lane.b32.xlu0 %v1327, 64
    %v1331 = vpop.permute.xlu0 %1330
    %v1333 = vmul.f32 %v1327, %v1331
    %1335 = vrot.lane.b32.xlu0 %v1333, 32
    %v1336 = vpop.permute.xlu0 %1335
    %v1338 = vadd.f32 %v1328, %v1336
    %v1339 = vtanh.pop %v1338
    %1341 = vrot.lane.b32.xlu0 %v1339, 64
    %v1342 = vpop.permute.xlu0 %1341
    %v1344 = vmul.f32 %v1327, %v1342
    %v1345 = vld [vmem:[#allocation2 + $0x30] sm:$0xff]
    %1347 = vrot.lane.b32.xlu0 %v1176, 32
    %v1348 = vpop.permute.xlu0 %1347
    %v1349 = vsel %vm195, %v1348, 0
    %1351 = vmatpush.msra.mxu0 0.0
    %1352 = vmatpush.msra.mxu0 0.0
    %1353 = vmatpush.msra.mxu0 0.0
    %1354 = vmatpush.msra.mxu0 0.0
    %1355 = vmatpush.msra.mxu0 0.0
    %1356 = vmatpush.msra.mxu0 0.0
    %1357 = vmatpush.msra.mxu0 0.0
    %1358 = vmatpush.msra.mxu0 0.0
    %1359 = vmatpush.msra.mxu0 0.0
    %1360 = vmatpush.msra.mxu0 0.0
    %1361 = vmatpush.msra.mxu0 0.0
    %1362 = vmatpush.msra.mxu0 0.0
    %1363 = vmatpush.msra.mxu0 %v194
    %1364 = vmatpush.msra.mxu0 %v193
    %1365 = vmatpush.msra.mxu0 %v192
    %1366 = vmatpush.msra.mxu0 %v191
    %1367 = vmatmul.f32.gmra.mxu0 %v1349
    %v1368 = vpop.f32.mrf.mxu0
    %v1369 = vadd.f32 0.0, %v1368
    %1370 = vdwg.mxu0
    %v1371 = vadd.f32 %v1345, %v1369
    %v1372 = vxor.u32 %v1371, 2147483648
    %v1373 = vmul.f32 %v1372, 1.442695
    %v1374 = vpow.pop %v1373
    %v1375 = vadd.f32 %v1374, 1.0
    %v1376 = vrcp.pop %v1375
    %v1377 = vmul.f32 %v1375, %v1376
    %v1378 = vsub.f32 1.0, %v1377
    %v1379 = vmul.f32 %v1376, %v1378
    %v1380 = vadd.f32 %v1376, %v1379
    %vm1381 = vweird.f32 %v1375
    %vm1382 = vweird.f32 %v1376
    %vm1383 = vmor %vm1381, %vm1382
    %v1384 = vsel %vm1383, %v1376, %v1380
    %v1385 = vand.u32 2147483647, %v1375
    %vm1386 = vcmp.eq.f32.partialorder %v1385, 8.507059e+37
    %v1387 = vand.u32 %v1375, 2147483648
    %v1388 = vor.u32 1.1754944e-38, %v1387
    %v1389 = vsel %vm1386, %v1388, %v1384
    %v1390 = vmul.f32 1.0, %v1389
    %v1391 = vtanh.pop %v1371
    %v1392 = vsel %vm189, %v1391, %v1390
    %v1393 = vmul.f32 %v1392, %v1170
    %1395 = vrot.lane.b32.xlu0 %v1392, 64
    %v1396 = vpop.permute.xlu0 %1395
    %v1398 = vmul.f32 %v1392, %v1396
    %1400 = vrot.lane.b32.xlu0 %v1398, 32
    %v1401 = vpop.permute.xlu0 %1400
    %v1403 = vadd.f32 %v1393, %v1401
    %v1404 = vtanh.pop %v1403
    %1406 = vrot.lane.b32.xlu0 %v1404, 64
    %v1407 = vpop.permute.xlu0 %1406
    %v1409 = vmul.f32 %v1392, %v1407
    %1411 = vrot.lane.b32.xlu0 %v1260, 32
    %v1412 = vpop.permute.xlu0 %1411
    %v1413 = vsel %vm195, %v1412, 0
    %1415 = vmatpush.msra.mxu0 0.0
    %1416 = vmatpush.msra.mxu0 0.0
    %1417 = vmatpush.msra.mxu0 0.0
    %1418 = vmatpush.msra.mxu0 0.0
    %1419 = vmatpush.msra.mxu0 0.0
    %1420 = vmatpush.msra.mxu0 0.0
    %1421 = vmatpush.msra.mxu0 0.0
    %1422 = vmatpush.msra.mxu0 0.0
    %1423 = vmatpush.msra.mxu0 0.0
    %1424 = vmatpush.msra.mxu0 0.0
    %1425 = vmatpush.msra.mxu0 0.0
    %1426 = vmatpush.msra.mxu0 0.0
    %1427 = vmatpush.msra.mxu0 %v330
    %1428 = vmatpush.msra.mxu0 %v329
    %1429 = vmatpush.msra.mxu0 %v328
    %1430 = vmatpush.msra.mxu0 %v327
    %1431 = vmatmul.f32.gmra.mxu0 %v1413
    %v1432 = vpop.f32.mrf.mxu0
    %v1433 = vadd.f32 0.0, %v1432
    %1434 = vdwg.mxu0
    %1435 = vmatpush.msra.mxu0 0.0
    %1436 = vmatpush.msra.mxu0 0.0
    %1437 = vmatpush.msra.mxu0 0.0
    %1438 = vmatpush.msra.mxu0 0.0
    %1439 = vmatpush.msra.mxu0 0.0
    %1440 = vmatpush.msra.mxu0 0.0
    %1441 = vmatpush.msra.mxu0 0.0
    %1442 = vmatpush.msra.mxu0 0.0
    %1443 = vmatpush.msra.mxu0 0.0
    %1444 = vmatpush.msra.mxu0 0.0
    %1445 = vmatpush.msra.mxu0 0.0
    %1446 = vmatpush.msra.mxu0 0.0
    %1447 = vmatpush.msra.mxu0 %v326
    %1448 = vmatpush.msra.mxu0 %v325
    %1449 = vmatpush.msra.mxu0 %v324
    %1450 = vmatpush.msra.mxu0 %v323
    %1451 = vmatmul.f32.gmra.mxu0 %v1349
    %v1452 = vpop.f32.mrf.mxu0
    %v1453 = vadd.f32 %v1433, %v1452
    %1454 = vdwg.mxu0
    %v1455 = vadd.f32 %v1453, %v179
    %v1456 = vxor.u32 %v1455, 2147483648
    %v1457 = vmul.f32 %v1456, 1.442695
    %v1458 = vpow.pop %v1457
    %v1459 = vadd.f32 %v1458, 1.0
    %v1460 = vrcp.pop %v1459
    %v1461 = vmul.f32 %v1459, %v1460
    %v1462 = vsub.f32 1.0, %v1461
    %v1463 = vmul.f32 %v1460, %v1462
    %v1464 = vadd.f32 %v1460, %v1463
    %vm1465 = vweird.f32 %v1459
    %vm1466 = vweird.f32 %v1460
    %vm1467 = vmor %vm1465, %vm1466
    %v1468 = vsel %vm1467, %v1460, %v1464
    %v1469 = vand.u32 2147483647, %v1459
    %vm1470 = vcmp.eq.f32.partialorder %v1469, 8.507059e+37
    %v1471 = vand.u32 %v1459, 2147483648
    %v1472 = vor.u32 1.1754944e-38, %v1471
    %v1473 = vsel %vm1470, %v1472, %v1468
    %v1474 = vmul.f32 1.0, %v1473
    %v1475 = vtanh.pop %v1455
    %v1476 = vsel %vm189, %v1475, %v1474
    %v1477 = vmul.f32 %v1476, %v1254
    %1479 = vrot.lane.b32.xlu0 %v1476, 64
    %v1480 = vpop.permute.xlu0 %1479
    %v1482 = vmul.f32 %v1476, %v1480
    %1484 = vrot.lane.b32.xlu0 %v1482, 32
    %v1485 = vpop.permute.xlu0 %1484
    %v1487 = vadd.f32 %v1477, %v1485
    %v1488 = vtanh.pop %v1487
    %1490 = vrot.lane.b32.xlu0 %v1488, 64
    %v1491 = vpop.permute.xlu0 %1490
    %v1493 = vmul.f32 %v1476, %v1491
    %1495 = vrot.lane.b32.xlu0 %v1344, 32
    %v1496 = vpop.permute.xlu0 %1495
    %v1497 = vsel %vm195, %v1496, 0
    %1499 = vmatpush.msra.mxu0 0.0
    %1500 = vmatpush.msra.mxu0 0.0
    %1501 = vmatpush.msra.mxu0 0.0
    %1502 = vmatpush.msra.mxu0 0.0
    %1503 = vmatpush.msra.mxu0 0.0
    %1504 = vmatpush.msra.mxu0 0.0
    %1505 = vmatpush.msra.mxu0 0.0
    %1506 = vmatpush.msra.mxu0 0.0
    %1507 = vmatpush.msra.mxu0 0.0
    %1508 = vmatpush.msra.mxu0 0.0
    %1509 = vmatpush.msra.mxu0 0.0
    %1510 = vmatpush.msra.mxu0 0.0
    %1511 = vmatpush.msra.mxu0 %v566
    %1512 = vmatpush.msra.mxu0 %v565
    %1513 = vmatpush.msra.mxu0 %v564
    %1514 = vmatpush.msra.mxu0 %v563
    %1515 = vmatmul.f32.gmra.mxu0 %v1497
    %v1516 = vpop.f32.mrf.mxu0
    %v1517 = vadd.f32 0.0, %v1516
    %1518 = vdwg.mxu0
    %1519 = vmatpush.msra.mxu0 0.0
    %1520 = vmatpush.msra.mxu0 0.0
    %1521 = vmatpush.msra.mxu0 0.0
    %1522 = vmatpush.msra.mxu0 0.0
    %1523 = vmatpush.msra.mxu0 0.0
    %1524 = vmatpush.msra.mxu0 0.0
    %1525 = vmatpush.msra.mxu0 0.0
    %1526 = vmatpush.msra.mxu0 0.0
    %1527 = vmatpush.msra.mxu0 0.0
    %1528 = vmatpush.msra.mxu0 0.0
    %1529 = vmatpush.msra.mxu0 0.0
    %1530 = vmatpush.msra.mxu0 0.0
    %1531 = vmatpush.msra.mxu0 %v562
    %1532 = vmatpush.msra.mxu0 %v561
    %1533 = vmatpush.msra.mxu0 %v560
    %1534 = vmatpush.msra.mxu0 %v559
    %1535 = vmatmul.f32.gmra.mxu0 %v1413
    %v1536 = vpop.f32.mrf.mxu0
    %v1537 = vadd.f32 %v1517, %v1536
    %1538 = vdwg.mxu0
    %v1539 = vadd.f32 %v1537, %v183
    %v1540 = vxor.u32 %v1539, 2147483648
    %v1541 = vmul.f32 %v1540, 1.442695
    %v1542 = vpow.pop %v1541
    %v1543 = vadd.f32 %v1542, 1.0
    %v1544 = vrcp.pop %v1543
    %v1545 = vmul.f32 %v1543, %v1544
    %v1546 = vsub.f32 1.0, %v1545
    %v1547 = vmul.f32 %v1544, %v1546
    %v1548 = vadd.f32 %v1544, %v1547
    %vm1549 = vweird.f32 %v1543
    %vm1550 = vweird.f32 %v1544
    %vm1551 = vmor %vm1549, %vm1550
    %v1552 = vsel %vm1551, %v1544, %v1548
    %v1553 = vand.u32 2147483647, %v1543
    %vm1554 = vcmp.eq.f32.partialorder %v1553, 8.507059e+37
    %v1555 = vand.u32 %v1543, 2147483648
    %v1556 = vor.u32 1.1754944e-38, %v1555
    %v1557 = vsel %vm1554, %v1556, %v1552
    %v1558 = vmul.f32 1.0, %v1557
    %v1559 = vtanh.pop %v1539
    %v1560 = vsel %vm189, %v1559, %v1558
    %v1561 = vmul.f32 %v1560, %v1338
    %1563 = vrot.lane.b32.xlu0 %v1560, 64
    %v1564 = vpop.permute.xlu0 %1563
    %v1566 = vmul.f32 %v1560, %v1564
    %1568 = vrot.lane.b32.xlu0 %v1566, 32
    %v1569 = vpop.permute.xlu0 %1568
    %v1571 = vadd.f32 %v1561, %v1569
    %v1572 = vtanh.pop %v1571
    %1574 = vrot.lane.b32.xlu0 %v1572, 64
    %v1575 = vpop.permute.xlu0 %1574
    %v1577 = vmul.f32 %v1560, %v1575
    %v1578 = vld [vmem:[#allocation2 + $0x38] sm:$0xff]
    %1580 = vrot.lane.b32.xlu0 %v1409, 32
    %v1581 = vpop.permute.xlu0 %1580
    %v1582 = vsel %vm195, %v1581, 0
    %1584 = vmatpush.msra.mxu0 0.0
    %1585 = vmatpush.msra.mxu0 0.0
    %1586 = vmatpush.msra.mxu0 0.0
    %1587 = vmatpush.msra.mxu0 0.0
    %1588 = vmatpush.msra.mxu0 0.0
    %1589 = vmatpush.msra.mxu0 0.0
    %1590 = vmatpush.msra.mxu0 0.0
    %1591 = vmatpush.msra.mxu0 0.0
    %1592 = vmatpush.msra.mxu0 0.0
    %1593 = vmatpush.msra.mxu0 0.0
    %1594 = vmatpush.msra.mxu0 0.0
    %1595 = vmatpush.msra.mxu0 0.0
    %1596 = vmatpush.msra.mxu0 %v194
    %1597 = vmatpush.msra.mxu0 %v193
    %1598 = vmatpush.msra.mxu0 %v192
    %1599 = vmatpush.msra.mxu0 %v191
    %1600 = vmatmul.f32.gmra.mxu0 %v1582
    %v1601 = vpop.f32.mrf.mxu0
    %v1602 = vadd.f32 0.0, %v1601
    %1603 = vdwg.mxu0
    %v1604 = vadd.f32 %v1578, %v1602
    %v1605 = vxor.u32 %v1604, 2147483648
    %v1606 = vmul.f32 %v1605, 1.442695
    %v1607 = vpow.pop %v1606
    %v1608 = vadd.f32 %v1607, 1.0
    %v1609 = vrcp.pop %v1608
    %v1610 = vmul.f32 %v1608, %v1609
    %v1611 = vsub.f32 1.0, %v1610
    %v1612 = vmul.f32 %v1609, %v1611
    %v1613 = vadd.f32 %v1609, %v1612
    %vm1614 = vweird.f32 %v1608
    %vm1615 = vweird.f32 %v1609
    %vm1616 = vmor %vm1614, %vm1615
    %v1617 = vsel %vm1616, %v1609, %v1613
    %v1618 = vand.u32 2147483647, %v1608
    %vm1619 = vcmp.eq.f32.partialorder %v1618, 8.507059e+37
    %v1620 = vand.u32 %v1608, 2147483648
    %v1621 = vor.u32 1.1754944e-38, %v1620
    %v1622 = vsel %vm1619, %v1621, %v1617
    %v1623 = vmul.f32 1.0, %v1622
    %v1624 = vtanh.pop %v1604
    %v1625 = vsel %vm189, %v1624, %v1623
    %v1626 = vmul.f32 %v1625, %v1403
    %1628 = vrot.lane.b32.xlu0 %v1625, 64
    %v1629 = vpop.permute.xlu0 %1628
    %v1631 = vmul.f32 %v1625, %v1629
    %1633 = vrot.lane.b32.xlu0 %v1631, 32
    %v1634 = vpop.permute.xlu0 %1633
    %v1636 = vadd.f32 %v1626, %v1634
    %v1637 = vtanh.pop %v1636
    %1639 = vrot.lane.b32.xlu0 %v1637, 64
    %v1640 = vpop.permute.xlu0 %1639
    %v1642 = vmul.f32 %v1625, %v1640
    %1644 = vrot.lane.b32.xlu0 %v1493, 32
    %v1645 = vpop.permute.xlu0 %1644
    %v1646 = vsel %vm195, %v1645, 0
    %1648 = vmatpush.msra.mxu0 0.0
    %1649 = vmatpush.msra.mxu0 0.0
    %1650 = vmatpush.msra.mxu0 0.0
    %1651 = vmatpush.msra.mxu0 0.0
    %1652 = vmatpush.msra.mxu0 0.0
    %1653 = vmatpush.msra.mxu0 0.0
    %1654 = vmatpush.msra.mxu0 0.0
    %1655 = vmatpush.msra.mxu0 0.0
    %1656 = vmatpush.msra.mxu0 0.0
    %1657 = vmatpush.msra.mxu0 0.0
    %1658 = vmatpush.msra.mxu0 0.0
    %1659 = vmatpush.msra.mxu0 0.0
    %1660 = vmatpush.msra.mxu0 %v330
    %1661 = vmatpush.msra.mxu0 %v329
    %1662 = vmatpush.msra.mxu0 %v328
    %1663 = vmatpush.msra.mxu0 %v327
    %1664 = vmatmul.f32.gmra.mxu0 %v1646
    %v1665 = vpop.f32.mrf.mxu0
    %v1666 = vadd.f32 0.0, %v1665
    %1667 = vdwg.mxu0
    %1668 = vmatpush.msra.mxu0 0.0
    %1669 = vmatpush.msra.mxu0 0.0
    %1670 = vmatpush.msra.mxu0 0.0
    %1671 = vmatpush.msra.mxu0 0.0
    %1672 = vmatpush.msra.mxu0 0.0
    %1673 = vmatpush.msra.mxu0 0.0
    %1674 = vmatpush.msra.mxu0 0.0
    %1675 = vmatpush.msra.mxu0 0.0
    %1676 = vmatpush.msra.mxu0 0.0
    %1677 = vmatpush.msra.mxu0 0.0
    %1678 = vmatpush.msra.mxu0 0.0
    %1679 = vmatpush.msra.mxu0 0.0
    %1680 = vmatpush.msra.mxu0 %v326
    %1681 = vmatpush.msra.mxu0 %v325
    %1682 = vmatpush.msra.mxu0 %v324
    %1683 = vmatpush.msra.mxu0 %v323
    %1684 = vmatmul.f32.gmra.mxu0 %v1582
    %v1685 = vpop.f32.mrf.mxu0
    %v1686 = vadd.f32 %v1666, %v1685
    %1687 = vdwg.mxu0
    %v1688 = vadd.f32 %v1686, %v179
    %v1689 = vxor.u32 %v1688, 2147483648
    %v1690 = vmul.f32 %v1689, 1.442695
    %v1691 = vpow.pop %v1690
    %v1692 = vadd.f32 %v1691, 1.0
    %v1693 = vrcp.pop %v1692
    %v1694 = vmul.f32 %v1692, %v1693
    %v1695 = vsub.f32 1.0, %v1694
    %v1696 = vmul.f32 %v1693, %v1695
    %v1697 = vadd.f32 %v1693, %v1696
    %vm1698 = vweird.f32 %v1692
    %vm1699 = vweird.f32 %v1693
    %vm1700 = vmor %vm1698, %vm1699
    %v1701 = vsel %vm1700, %v1693, %v1697
    %v1702 = vand.u32 2147483647, %v1692
    %vm1703 = vcmp.eq.f32.partialorder %v1702, 8.507059e+37
    %v1704 = vand.u32 %v1692, 2147483648
    %v1705 = vor.u32 1.1754944e-38, %v1704
    %v1706 = vsel %vm1703, %v1705, %v1701
    %v1707 = vmul.f32 1.0, %v1706
    %v1708 = vtanh.pop %v1688
    %v1709 = vsel %vm189, %v1708, %v1707
    %v1710 = vmul.f32 %v1709, %v1487
    %1712 = vrot.lane.b32.xlu0 %v1709, 64
    %v1713 = vpop.permute.xlu0 %1712
    %v1715 = vmul.f32 %v1709, %v1713
    %1717 = vrot.lane.b32.xlu0 %v1715, 32
    %v1718 = vpop.permute.xlu0 %1717
    %v1720 = vadd.f32 %v1710, %v1718
    %v1721 = vtanh.pop %v1720
    %1723 = vrot.lane.b32.xlu0 %v1721, 64
    %v1724 = vpop.permute.xlu0 %1723
    %v1726 = vmul.f32 %v1709, %v1724
    %1728 = vrot.lane.b32.xlu0 %v1577, 32
    %v1729 = vpop.permute.xlu0 %1728
    %v1730 = vsel %vm195, %v1729, 0
    %1732 = vmatpush.msra.mxu0 0.0
    %1733 = vmatpush.msra.mxu0 0.0
    %1734 = vmatpush.msra.mxu0 0.0
    %1735 = vmatpush.msra.mxu0 0.0
    %1736 = vmatpush.msra.mxu0 0.0
    %1737 = vmatpush.msra.mxu0 0.0
    %1738 = vmatpush.msra.mxu0 0.0
    %1739 = vmatpush.msra.mxu0 0.0
    %1740 = vmatpush.msra.mxu0 0.0
    %1741 = vmatpush.msra.mxu0 0.0
    %1742 = vmatpush.msra.mxu0 0.0
    %1743 = vmatpush.msra.mxu0 0.0
    %1744 = vmatpush.msra.mxu0 %v566
    %1745 = vmatpush.msra.mxu0 %v565
    %1746 = vmatpush.msra.mxu0 %v564
    %1747 = vmatpush.msra.mxu0 %v563
    %1748 = vmatmul.f32.gmra.mxu0 %v1730
    %v1749 = vpop.f32.mrf.mxu0
    %v1750 = vadd.f32 0.0, %v1749
    %1751 = vdwg.mxu0
    %1752 = vmatpush.msra.mxu0 0.0
    %1753 = vmatpush.msra.mxu0 0.0
    %1754 = vmatpush.msra.mxu0 0.0
    %1755 = vmatpush.msra.mxu0 0.0
    %1756 = vmatpush.msra.mxu0 0.0
    %1757 = vmatpush.msra.mxu0 0.0
    %1758 = vmatpush.msra.mxu0 0.0
    %1759 = vmatpush.msra.mxu0 0.0
    %1760 = vmatpush.msra.mxu0 0.0
    %1761 = vmatpush.msra.mxu0 0.0
    %1762 = vmatpush.msra.mxu0 0.0
    %1763 = vmatpush.msra.mxu0 0.0
    %1764 = vmatpush.msra.mxu0 %v562
    %1765 = vmatpush.msra.mxu0 %v561
    %1766 = vmatpush.msra.mxu0 %v560
    %1767 = vmatpush.msra.mxu0 %v559
    %1768 = vmatmul.f32.gmra.mxu0 %v1646
    %v1769 = vpop.f32.mrf.mxu0
    %v1770 = vadd.f32 %v1750, %v1769
    %1771 = vdwg.mxu0
    %v1772 = vadd.f32 %v1770, %v183
    %v1773 = vxor.u32 %v1772, 2147483648
    %v1774 = vmul.f32 %v1773, 1.442695
    %v1775 = vpow.pop %v1774
    %v1776 = vadd.f32 %v1775, 1.0
    %v1777 = vrcp.pop %v1776
    %v1778 = vmul.f32 %v1776, %v1777
    %v1779 = vsub.f32 1.0, %v1778
    %v1780 = vmul.f32 %v1777, %v1779
    %v1781 = vadd.f32 %v1777, %v1780
    %vm1782 = vweird.f32 %v1776
    %vm1783 = vweird.f32 %v1777
    %vm1784 = vmor %vm1782, %vm1783
    %v1785 = vsel %vm1784, %v1777, %v1781
    %v1786 = vand.u32 2147483647, %v1776
    %vm1787 = vcmp.eq.f32.partialorder %v1786, 8.507059e+37
    %v1788 = vand.u32 %v1776, 2147483648
    %v1789 = vor.u32 1.1754944e-38, %v1788
    %v1790 = vsel %vm1787, %v1789, %v1785
    %v1791 = vmul.f32 1.0, %v1790
    %v1792 = vtanh.pop %v1772
    %v1793 = vsel %vm189, %v1792, %v1791
    %v1794 = vmul.f32 %v1793, %v1571
    %1796 = vrot.lane.b32.xlu0 %v1793, 64
    %v1797 = vpop.permute.xlu0 %1796
    %v1799 = vmul.f32 %v1793, %v1797
    %1801 = vrot.lane.b32.xlu0 %v1799, 32
    %v1802 = vpop.permute.xlu0 %1801
    %v1804 = vadd.f32 %v1794, %v1802
    %v1805 = vtanh.pop %v1804
    %1807 = vrot.lane.b32.xlu0 %v1805, 64
    %v1808 = vpop.permute.xlu0 %1807
    %v1810 = vmul.f32 %v1793, %v1808
    %1812 = vrot.lane.b32.xlu0 %v1726, 32
    %v1813 = vpop.permute.xlu0 %1812
    %v1814 = vsel %vm195, %v1813, 0
    %1816 = vmatpush.msra.mxu0 0.0
    %1817 = vmatpush.msra.mxu0 0.0
    %1818 = vmatpush.msra.mxu0 0.0
    %1819 = vmatpush.msra.mxu0 0.0
    %1820 = vmatpush.msra.mxu0 0.0
    %1821 = vmatpush.msra.mxu0 0.0
    %1822 = vmatpush.msra.mxu0 0.0
    %1823 = vmatpush.msra.mxu0 0.0
    %1824 = vmatpush.msra.mxu0 0.0
    %1825 = vmatpush.msra.mxu0 0.0
    %1826 = vmatpush.msra.mxu0 0.0
    %1827 = vmatpush.msra.mxu0 0.0
    %1828 = vmatpush.msra.mxu0 %v330
    %1829 = vmatpush.msra.mxu0 %v329
    %1830 = vmatpush.msra.mxu0 %v328
    %1831 = vmatpush.msra.mxu0 %v327
    %1832 = vmatmul.f32.gmra.mxu0 %v1814
    %v1833 = vpop.f32.mrf.mxu0
    %v1834 = vadd.f32 0.0, %v1833
    %1835 = vdwg.mxu0
    %1837 = vrot.lane.b32.xlu0 %v1642, 32
    %v1838 = vpop.permute.xlu0 %1837
    %v1839 = vsel %vm195, %v1838, 0
    %1841 = vmatpush.msra.mxu0 0.0
    %1842 = vmatpush.msra.mxu0 0.0
    %1843 = vmatpush.msra.mxu0 0.0
    %1844 = vmatpush.msra.mxu0 0.0
    %1845 = vmatpush.msra.mxu0 0.0
    %1846 = vmatpush.msra.mxu0 0.0
    %1847 = vmatpush.msra.mxu0 0.0
    %1848 = vmatpush.msra.mxu0 0.0
    %1849 = vmatpush.msra.mxu0 0.0
    %1850 = vmatpush.msra.mxu0 0.0
    %1851 = vmatpush.msra.mxu0 0.0
    %1852 = vmatpush.msra.mxu0 0.0
    %1853 = vmatpush.msra.mxu0 %v326
    %1854 = vmatpush.msra.mxu0 %v325
    %1855 = vmatpush.msra.mxu0 %v324
    %1856 = vmatpush.msra.mxu0 %v323
    %1857 = vmatmul.f32.gmra.mxu0 %v1839
    %v1858 = vpop.f32.mrf.mxu0
    %v1859 = vadd.f32 %v1834, %v1858
    %1860 = vdwg.mxu0
    %v1861 = vadd.f32 %v1859, %v179
    %v1862 = vxor.u32 %v1861, 2147483648
    %v1863 = vmul.f32 %v1862, 1.442695
    %v1864 = vpow.pop %v1863
    %v1865 = vadd.f32 %v1864, 1.0
    %v1866 = vrcp.pop %v1865
    %v1867 = vmul.f32 %v1865, %v1866
    %v1868 = vsub.f32 1.0, %v1867
    %v1869 = vmul.f32 %v1866, %v1868
    %v1870 = vadd.f32 %v1866, %v1869
    %vm1871 = vweird.f32 %v1865
    %vm1872 = vweird.f32 %v1866
    %vm1873 = vmor %vm1871, %vm1872
    %v1874 = vsel %vm1873, %v1866, %v1870
    %v1875 = vand.u32 2147483647, %v1865
    %vm1876 = vcmp.eq.f32.partialorder %v1875, 8.507059e+37
    %v1877 = vand.u32 %v1865, 2147483648
    %v1878 = vor.u32 1.1754944e-38, %v1877
    %v1879 = vsel %vm1876, %v1878, %v1874
    %v1880 = vmul.f32 1.0, %v1879
    %v1881 = vtanh.pop %v1861
    %v1882 = vsel %vm189, %v1881, %v1880
    %v1883 = vmul.f32 %v1882, %v1720
    %1885 = vrot.lane.b32.xlu0 %v1882, 64
    %v1886 = vpop.permute.xlu0 %1885
    %v1888 = vmul.f32 %v1882, %v1886
    %1890 = vrot.lane.b32.xlu0 %v1888, 32
    %v1891 = vpop.permute.xlu0 %1890
    %v1893 = vadd.f32 %v1883, %v1891
    %v1894 = vtanh.pop %v1893
    %1896 = vrot.lane.b32.xlu0 %v1894, 64
    %v1897 = vpop.permute.xlu0 %1896
    %v1899 = vmul.f32 %v1882, %v1897
    %1901 = vrot.lane.b32.xlu0 %v1810, 32
    %v1902 = vpop.permute.xlu0 %1901
    %v1903 = vsel %vm195, %v1902, 0
    %1905 = vmatpush.msra.mxu0 0.0
    %1906 = vmatpush.msra.mxu0 0.0
    %1907 = vmatpush.msra.mxu0 0.0
    %1908 = vmatpush.msra.mxu0 0.0
    %1909 = vmatpush.msra.mxu0 0.0
    %1910 = vmatpush.msra.mxu0 0.0
    %1911 = vmatpush.msra.mxu0 0.0
    %1912 = vmatpush.msra.mxu0 0.0
    %1913 = vmatpush.msra.mxu0 0.0
    %1914 = vmatpush.msra.mxu0 0.0
    %1915 = vmatpush.msra.mxu0 0.0
    %1916 = vmatpush.msra.mxu0 0.0
    %1917 = vmatpush.msra.mxu0 %v566
    %1918 = vmatpush.msra.mxu0 %v565
    %1919 = vmatpush.msra.mxu0 %v564
    %1920 = vmatpush.msra.mxu0 %v563
    %1921 = vmatmul.f32.gmra.mxu0 %v1903
    %v1922 = vpop.f32.mrf.mxu0
    %v1923 = vadd.f32 0.0, %v1922
    %1924 = vdwg.mxu0
    %1925 = vmatpush.msra.mxu0 0.0
    %1926 = vmatpush.msra.mxu0 0.0
    %1927 = vmatpush.msra.mxu0 0.0
    %1928 = vmatpush.msra.mxu0 0.0
    %1929 = vmatpush.msra.mxu0 0.0
    %1930 = vmatpush.msra.mxu0 0.0
    %1931 = vmatpush.msra.mxu0 0.0
    %1932 = vmatpush.msra.mxu0 0.0
    %1933 = vmatpush.msra.mxu0 0.0
    %1934 = vmatpush.msra.mxu0 0.0
    %1935 = vmatpush.msra.mxu0 0.0
    %1936 = vmatpush.msra.mxu0 0.0
    %1937 = vmatpush.msra.mxu0 %v562
    %1938 = vmatpush.msra.mxu0 %v561
    %1939 = vmatpush.msra.mxu0 %v560
    %1940 = vmatpush.msra.mxu0 %v559
    %1941 = vmatmul.f32.gmra.mxu0 %v1814
    %v1942 = vpop.f32.mrf.mxu0
    %v1943 = vadd.f32 %v1923, %v1942
    %1944 = vdwg.mxu0
    %v1945 = vadd.f32 %v1943, %v183
    %v1946 = vxor.u32 %v1945, 2147483648
    %v1947 = vmul.f32 %v1946, 1.442695
    %v1948 = vpow.pop %v1947
    %v1949 = vadd.f32 %v1948, 1.0
    %v1950 = vrcp.pop %v1949
    %v1951 = vmul.f32 %v1949, %v1950
    %v1952 = vsub.f32 1.0, %v1951
    %v1953 = vmul.f32 %v1950, %v1952
    %v1954 = vadd.f32 %v1950, %v1953
    %vm1955 = vweird.f32 %v1949
    %vm1956 = vweird.f32 %v1950
    %vm1957 = vmor %vm1955, %vm1956
    %v1958 = vsel %vm1957, %v1950, %v1954
    %v1959 = vand.u32 2147483647, %v1949
    %vm1960 = vcmp.eq.f32.partialorder %v1959, 8.507059e+37
    %v1961 = vand.u32 %v1949, 2147483648
    %v1962 = vor.u32 1.1754944e-38, %v1961
    %v1963 = vsel %vm1960, %v1962, %v1958
    %v1964 = vmul.f32 1.0, %v1963
    %v1965 = vtanh.pop %v1945
    %v1966 = vsel %vm189, %v1965, %v1964
    %v1967 = vmul.f32 %v1966, %v1804
    %1969 = vrot.lane.b32.xlu0 %v1966, 64
    %v1970 = vpop.permute.xlu0 %1969
    %v1972 = vmul.f32 %v1966, %v1970
    %1974 = vrot.lane.b32.xlu0 %v1972, 32
    %v1975 = vpop.permute.xlu0 %1974
    %v1977 = vadd.f32 %v1967, %v1975
    %v1978 = vtanh.pop %v1977
    %1980 = vrot.lane.b32.xlu0 %v1978, 64
    %v1981 = vpop.permute.xlu0 %1980
    %v1983 = vmul.f32 %v1966, %v1981
    %1985 = vrot.lane.b32.xlu0 %v1983, 32
    %v1986 = vpop.permute.xlu0 %1985
    %v1987 = vsel %vm195, %v1986, 0
    %1989 = vmatpush.msra.mxu0 0.0
    %1990 = vmatpush.msra.mxu0 0.0
    %1991 = vmatpush.msra.mxu0 0.0
    %1992 = vmatpush.msra.mxu0 0.0
    %1993 = vmatpush.msra.mxu0 0.0
    %1994 = vmatpush.msra.mxu0 0.0
    %1995 = vmatpush.msra.mxu0 0.0
    %1996 = vmatpush.msra.mxu0 0.0
    %1997 = vmatpush.msra.mxu0 0.0
    %1998 = vmatpush.msra.mxu0 0.0
    %1999 = vmatpush.msra.mxu0 0.0
    %2000 = vmatpush.msra.mxu0 0.0
    %2001 = vmatpush.msra.mxu0 %v566
    %2002 = vmatpush.msra.mxu0 %v565
    %2003 = vmatpush.msra.mxu0 %v564
    %2004 = vmatpush.msra.mxu0 %v563
    %2005 = vmatmul.f32.gmra.mxu0 %v1987
    %v2006 = vpop.f32.mrf.mxu0
    %v2007 = vadd.f32 0.0, %v2006
    %2008 = vdwg.mxu0
    %2010 = vrot.lane.b32.xlu0 %v1899, 32
    %v2011 = vpop.permute.xlu0 %2010
    %v2012 = vsel %vm195, %v2011, 0
    %2014 = vmatpush.msra.mxu0 0.0
    %2015 = vmatpush.msra.mxu0 0.0
    %2016 = vmatpush.msra.mxu0 0.0
    %2017 = vmatpush.msra.mxu0 0.0
    %2018 = vmatpush.msra.mxu0 0.0
    %2019 = vmatpush.msra.mxu0 0.0
    %2020 = vmatpush.msra.mxu0 0.0
    %2021 = vmatpush.msra.mxu0 0.0
    %2022 = vmatpush.msra.mxu0 0.0
    %2023 = vmatpush.msra.mxu0 0.0
    %2024 = vmatpush.msra.mxu0 0.0
    %2025 = vmatpush.msra.mxu0 0.0
    %2026 = vmatpush.msra.mxu0 %v562
    %2027 = vmatpush.msra.mxu0 %v561
    %2028 = vmatpush.msra.mxu0 %v560
    %2029 = vmatpush.msra.mxu0 %v559
    %2030 = vmatmul.f32.gmra.mxu0 %v2012
    %v2031 = vpop.f32.mrf.mxu0
    %v2032 = vadd.f32 %v2007, %v2031
    %2033 = vdwg.mxu0
    %v2034 = vadd.f32 %v2032, %v183
    %v2035 = vxor.u32 %v2034, 2147483648
    %v2036 = vmul.f32 %v2035, 1.442695
    %v2037 = vpow.pop %v2036
    %v2038 = vadd.f32 %v2037, 1.0
    %v2039 = vrcp.pop %v2038
    %v2040 = vmul.f32 %v2038, %v2039
    %v2041 = vsub.f32 1.0, %v2040
    %v2042 = vmul.f32 %v2039, %v2041
    %v2043 = vadd.f32 %v2039, %v2042
    %vm2044 = vweird.f32 %v2038
    %vm2045 = vweird.f32 %v2039
    %vm2046 = vmor %vm2044, %vm2045
    %v2047 = vsel %vm2046, %v2039, %v2043
    %v2048 = vand.u32 2147483647, %v2038
    %vm2049 = vcmp.eq.f32.partialorder %v2048, 8.507059e+37
    %v2050 = vand.u32 %v2038, 2147483648
    %v2051 = vor.u32 1.1754944e-38, %v2050
    %v2052 = vsel %vm2049, %v2051, %v2047
    %v2053 = vmul.f32 1.0, %v2052
    %v2054 = vtanh.pop %v2034
    %v2055 = vsel %vm189, %v2054, %v2053
    %v2056 = vmul.f32 %v2055, %v1977
    %2058 = vrot.lane.b32.xlu0 %v2055, 64
    %v2059 = vpop.permute.xlu0 %2058
    %v2061 = vmul.f32 %v2055, %v2059
    %2063 = vrot.lane.b32.xlu0 %v2061, 32
    %v2064 = vpop.permute.xlu0 %2063
    %v2066 = vadd.f32 %v2056, %v2064
    %v2067 = vtanh.pop %v2066
    %2069 = vrot.lane.b32.xlu0 %v2067, 64
    %v2070 = vpop.permute.xlu0 %2069
    %v2072 = vmul.f32 %v2055, %v2070
    %v2073 = vld [vmem:[%s10] sm:$0xff]
    %v2074 = vld [vmem:[%s10 + $0x8] sm:$0xff]
    %v2075 = vld [vmem:[%s10 + $0x10] sm:$0xff]
    %v2076 = vld [vmem:[%s10 + $0x18] sm:$0xff]
    %v2077 = vld [vmem:[%s11] sm:$0x1]
    %v2079 = vperm.slane %v2077, 0
    %2082 = vrot.lane.b32.xlu0 %v2072, 32
    %v2083 = vpop.permute.xlu0 %2082
    %v2084 = vsel %vm195, %v2083, 0
    %2086 = vmatpush.msra.mxu0 0.0
    %2087 = vmatpush.msra.mxu0 0.0
    %2088 = vmatpush.msra.mxu0 0.0
    %2089 = vmatpush.msra.mxu0 0.0
    %2090 = vmatpush.msra.mxu0 0.0
    %2091 = vmatpush.msra.mxu0 0.0
    %2092 = vmatpush.msra.mxu0 0.0
    %2093 = vmatpush.msra.mxu0 0.0
    %2094 = vmatpush.msra.mxu0 0.0
    %2095 = vmatpush.msra.mxu0 0.0
    %2096 = vmatpush.msra.mxu0 0.0
    %2097 = vmatpush.msra.mxu0 0.0
    %2098 = vmatpush.msra.mxu0 %v2076
    %2099 = vmatpush.msra.mxu0 %v2075
    %2100 = vmatpush.msra.mxu0 %v2074
    %2101 = vmatpush.msra.mxu0 %v2073
    %2102 = vmatmul.f32.gmra.mxu0 %v2084
    %v2103 = vpop.f32.mrf.mxu0
    %v2104 = vadd.f32 %v2079, %v2103
    %2105 = vdwg.mxu0
    %vm2106 = vcmask 64512
    %2107 = vst.msk [vmem:[#allocation9] sm:$0xff] %vm2106, %v2104
    // Predicated region
    $region62: #{tpu_custom_call.1} parent=1 // pred_check
      _
    $region63: #{tpu_custom_call.1} parent=1 // pred_check_branch
      %2109 = sbr.rel (0) target = $region65
    $region64: #{tpu_custom_call.1} parent=1 // pred_region
      %2111 = vsyncadd [#allocation5], 0
      %s2113 = sshll.u32 [#allocation9], 4
      %s2114 = int_to_ptr.vmem [resolvable:$true] %s2113
      %s2115 = sshll.u32 %s12, 4
      %s2116 = int_to_ptr.hbm [resolvable:$true] %s2115
      %2118 = dma.vmem_to_hbm [thread:$0]  %s2114, 128, %s2116, [#allocation5]
    $region65: #{tpu_custom_call.1} parent=1 // pred_fallthru
      _
    // Predicated region
    $region66: #{tpu_custom_call.1} parent=1 // pred_check
      _
    $region67: #{tpu_custom_call.1} parent=1 // pred_check_branch
      %2120 = sbr.rel (0) target = $region69
    $region68: #{tpu_custom_call.1} parent=1 // pred_region
      %2122 = dma.done [#allocation5], 128
    $region69: #{tpu_custom_call.1} parent=1 // pred_fallthru
      _
    %2123 = vsyncpa [#allocation4], 1
    %2124 = vsyncpa [#allocation7], 1
    %2125 = vsyncpa [#allocation5], 1

</llo_original>
